<compile_context>
chip_gen: v7x
topology: tpu7x:2x2x1
jax: 0.10.0
libtpu: 0.0.40
codegen_flags: <defaults>
</compile_context>

<pallas_src>
import jax
import jax.numpy as jnp
import numpy as np
from jax.experimental import pallas as pl
from jax.experimental.pallas import tpu as pltpu


def _lstm_mlp_kernel(x_ref,             # (T*B, I)   time-major flattened input
                     wih_ref,           # (I, 4H)    gate cols [i,f,o,g]; i/f/o pre-scaled 0.5
                     whh_ref,           # (H, 4H)    same reorder / scale
                     b_ref,             # (1, 4H)    b_ih + b_hh, same reorder / scale
                     w1_ref, b1_ref,    # (H, D1), (1, D1)
                     w2_ref, b2_ref,    # (D1, D2), (1, D2)
                     w3_ref, b3_ref,    # (D2, 2), (1, 2)
                     out_ref):          # (B, 2)
    B = out_ref.shape[0]
    TB, _ = x_ref.shape
    T = TB // B
    H = whh_ref.shape[0]

    # ---- hoisted input projection: one lane-dense matmul, bias folded in ----
    gx = (jnp.dot(x_ref[...], wih_ref[...], preferred_element_type=jnp.float32)
          + b_ref[...])                                           # (T*B, 4H)

    whh = whh_ref[...]
    h = jnp.zeros((B, H), jnp.float32)
    c = jnp.zeros((B, H), jnp.float32)

    # ---- fully-unrolled recurrence (T static); only h @ W_hh on the serial path ----
    for t in range(T):
        gates = gx[t * B:(t + 1) * B, :] + jnp.dot(
            h, whh, preferred_element_type=jnp.float32)           # (B, 4H)
        # single EUP transcendental for all four gates:
        #   sigmoid(z) = 0.5 * (tanh(z/2) + 1); i/f/o columns were pre-scaled by 0.5.
        tg = jnp.tanh(gates)
        sg = 0.5 * tg + 0.5
        i = sg[:, 0 * H:1 * H]
        f = sg[:, 1 * H:2 * H]
        o = sg[:, 2 * H:3 * H]
        g = tg[:, 3 * H:4 * H]
        c = f * c + i * g
        h = o * jnp.tanh(c)

    # ---- MLP head on relu(h_T) ----
    y = jnp.maximum(h, 0.0)
    y = jnp.maximum(jnp.dot(y, w1_ref[...], preferred_element_type=jnp.float32)
                    + b1_ref[...], 0.0)
    y = jnp.maximum(jnp.dot(y, w2_ref[...], preferred_element_type=jnp.float32)
                    + b2_ref[...], 0.0)
    logits = jnp.dot(y, w3_ref[...], preferred_element_type=jnp.float32) + b3_ref[...]

    # 2-class softmax without a cross-lane reduce: softmax_0 = sigmoid(l0 - l1).
    p0 = jax.nn.sigmoid(logits[:, 0:1] - logits[:, 1:2])          # (B, 1)
    out_ref[...] = jnp.concatenate([p0, 1.0 - p0], axis=1)


class GRUModel:
    """Deterministically-initialized JAX/Pallas port of GRU_model (a 1-layer LSTM + MLP)."""

    def __init__(self, input_size=1, num_layers=1, hidden_size=2, dim_1=300, dim_2=50,
                 key=jax.random.PRNGKey(0)):
        if num_layers != 1:
            # TODO(synk): multi-layer LSTM stacking not implemented (module default is 1 layer).
            raise NotImplementedError("only num_layers=1 supported")
        self.I, self.H, self.D1, self.D2 = input_size, hidden_size, dim_1, dim_2
        H = hidden_size

        ks = jax.random.split(key, 10)
        s_rnn = 1.0 / np.sqrt(hidden_size)

        def u(k, shape, scale):
            return jax.random.uniform(k, shape, jnp.float32, -scale, scale)

        H4 = 4 * hidden_size
        # PyTorch-layout LSTM params: weight_ih (4H, I), weight_hh (4H, H), biases (4H,).
        # Gate row order (PyTorch): [i, f, g, o].
        self.w_ih = u(ks[0], (H4, input_size), s_rnn)
        self.w_hh = u(ks[1], (H4, hidden_size), s_rnn)
        self.b_ih = u(ks[2], (H4,), s_rnn)
        self.b_hh = u(ks[3], (H4,), s_rnn)
        # Linear layers, PyTorch layout: weight (out, in), bias (out,).
        self.w1 = u(ks[4], (dim_1, hidden_size), 1.0 / np.sqrt(hidden_size))
        self.b1 = u(ks[5], (dim_1,), 1.0 / np.sqrt(hidden_size))
        self.w2 = u(ks[6], (dim_2, dim_1), 1.0 / np.sqrt(dim_1))
        self.b2 = u(ks[7], (dim_2,), 1.0 / np.sqrt(dim_1))
        self.w3 = u(ks[8], (2, dim_2), 1.0 / np.sqrt(dim_2))
        self.b3 = u(ks[9], (2,), 1.0 / np.sqrt(dim_2))

        # ---- pre-packed kernel params (done once at init) ----
        # Reorder gate blocks [i,f,g,o] -> [i,f,o,g], pre-scale i/f/o by 0.5 (for the
        # tanh-based sigmoid), and transpose so the kernel only right-multiplies.
        def pack(w):                       # (4H, X) -> (X, 4H)
            wi, wf, wg, wo = w[0:H], w[H:2 * H], w[2 * H:3 * H], w[3 * H:4 * H]
            return jnp.concatenate([0.5 * wi, 0.5 * wf, 0.5 * wo, wg], axis=0).T

        self._wih_k = pack(self.w_ih)                              # (I, 4H)
        self._whh_k = pack(self.w_hh)                              # (H, 4H)
        b = self.b_ih + self.b_hh
        bi, bf, bg, bo = b[0:H], b[H:2 * H], b[2 * H:3 * H], b[3 * H:4 * H]
        self._b_k = jnp.concatenate([0.5 * bi, 0.5 * bf, 0.5 * bo, bg])[None, :]  # (1, 4H)
        self._w1t = self.w1.T                                      # (H, D1)
        self._w2t = self.w2.T                                      # (D1, D2)
        self._w3t = self.w3.T                                      # (D2, 2)

    def __call__(self, x):
        # x: (B, T, I) float32, batch_first like PyTorch.
        B, T, _ = x.shape
        # Time-major, flattened: row t*B + b holds x[b, t, :].
        x_tm = jnp.transpose(x, (1, 0, 2)).reshape(T * B, self.I).astype(jnp.float32)

        args = [
            x_tm,
            self._wih_k, self._whh_k, self._b_k,
            self._w1t, self.b1[None, :],
            self._w2t, self.b2[None, :],
            self._w3t, self.b3[None, :],
        ]
        vmem = pl.BlockSpec(memory_space=pltpu.MemorySpace.VMEM)
        return pl.pallas_call(
            _lstm_mlp_kernel,
            out_shape=jax.ShapeDtypeStruct((B, 2), jnp.float32),
            in_specs=[vmem] * len(args),
            out_specs=vmem,
        )(*args)

    # Pure-JAX reference mirroring the PyTorch forward() exactly.
    def reference(self, x):
        B, T, _ = x.shape
        H = self.H

        def cell(x_t, h, c):
            g = x_t @ self.w_ih.T + self.b_ih + h @ self.w_hh.T + self.b_hh
            i = jax.nn.sigmoid(g[:, 0 * H:1 * H])
            f = jax.nn.sigmoid(g[:, 1 * H:2 * H])
            gg = jnp.tanh(g[:, 2 * H:3 * H])
            o = jax.nn.sigmoid(g[:, 3 * H:4 * H])
            c = f * c + i * gg
            h = o * jnp.tanh(c)
            return h, c

        h = jnp.zeros((B, H), jnp.float32)
        c = jnp.zeros((B, H), jnp.float32)
        for t in range(T):
            h, c = cell(x[:, t], h, c)           # r_out[:, -1, :] == h after last step
        y = jax.nn.relu(h)
        y = jax.nn.relu(y @ self.w1.T + self.b1)
        y = jax.nn.relu(y @ self.w2.T + self.b2)
        y = y @ self.w3.T + self.b3
        return jax.nn.softmax(y, axis=1)


if __name__ == "__main__":
    B, T, I, H, D1, D2 = 8, 16, 4, 32, 128, 64
    model = GRUModel(input_size=I, num_layers=1, hidden_size=H, dim_1=D1, dim_2=D2,
                     key=jax.random.PRNGKey(0))
    x = jax.random.normal(jax.random.PRNGKey(0), (B, T, I), dtype=jnp.float32)

    out = jax.block_until_ready(model(x))
    ref = jax.block_until_ready(model.reference(x))

    assert out.shape == (B, 2)
    # Slightly relaxed vs 1e-5: the kernel uses sigmoid(z) = 0.5*(tanh(z/2)+1) and the
    # 2-class softmax-as-sigmoid identity (both exact in real arithmetic, ULP-level in f32).
    np.testing.assert_allclose(np.asarray(out), np.asarray(ref), rtol=1e-4, atol=2e-5)
    print("KERNEL_OK")
</pallas_src>

<mosaic_0001>
module attributes {stable_mosaic.version = 11 : i64} {
  func.func @_lstm_mlp_kernel(%arg0: memref<128x4xf32, #tpu.memory_space<vmem>>, %arg1: memref<4x128xf32, #tpu.memory_space<vmem>>, %arg2: memref<32x128xf32, #tpu.memory_space<vmem>>, %arg3: memref<1x128xf32, #tpu.memory_space<vmem>>, %arg4: memref<32x128xf32, #tpu.memory_space<vmem>>, %arg5: memref<1x128xf32, #tpu.memory_space<vmem>>, %arg6: memref<128x64xf32, #tpu.memory_space<vmem>>, %arg7: memref<1x64xf32, #tpu.memory_space<vmem>>, %arg8: memref<64x2xf32, #tpu.memory_space<vmem>>, %arg9: memref<1x2xf32, #tpu.memory_space<vmem>>, %arg10: memref<8x2xf32, #tpu.memory_space<vmem>>) attributes {dimension_semantics = [], scalar_prefetch = 0 : i64, scratch_operands = 0 : i64, tpu.core_type = #tpu.core_type<tc>} {
    %c0 = arith.constant 0 : index
    %c0_0 = arith.constant 0 : index
    %0 = vector.load %arg0[%c0, %c0_0] : memref<128x4xf32, #tpu.memory_space<vmem>>, vector<128x4xf32>
    %c0_1 = arith.constant 0 : index
    %c0_2 = arith.constant 0 : index
    %1 = vector.load %arg1[%c0_1, %c0_2] : memref<4x128xf32, #tpu.memory_space<vmem>>, vector<4x128xf32>
    %cst = arith.constant dense<0.000000e+00> : vector<128x128xf32>
    %2 = tpu.matmul %0, %1, %cst {dimension_numbers = #tpu.dot_dimension_numbers<[1], [0], [0], [1], [0, 0, 1, 1], [], []>} : vector<128x4xf32>, vector<4x128xf32>, vector<128x128xf32> -> vector<128x128xf32>
    %c0_3 = arith.constant 0 : index
    %c0_4 = arith.constant 0 : index
    %3 = vector.load %arg3[%c0_3, %c0_4] : memref<1x128xf32, #tpu.memory_space<vmem>>, vector<1x128xf32>
    %4 = vector.broadcast %3 : vector<1x128xf32> to vector<128x128xf32>
    %5 = arith.addf %2, %4 : vector<128x128xf32>
    %c0_5 = arith.constant 0 : index
    %c0_6 = arith.constant 0 : index
    %6 = vector.load %arg2[%c0_5, %c0_6] : memref<32x128xf32, #tpu.memory_space<vmem>>, vector<32x128xf32>
    %cst_7 = arith.constant 0.000000e+00 : f32
    %7 = vector.broadcast %cst_7 : f32 to vector<8x32xf32>
    %cst_8 = arith.constant 0.000000e+00 : f32
    %8 = vector.broadcast %cst_8 : f32 to vector<8x32xf32>
    %9 = vector.extract_strided_slice %5 {offsets = [0, 0], sizes = [8, 128], strides = [1, 1]} : vector<128x128xf32> to vector<8x128xf32>
    %cst_9 = arith.constant dense<0.000000e+00> : vector<8x128xf32>
    %10 = tpu.matmul %7, %6, %cst_9 {dimension_numbers = #tpu.dot_dimension_numbers<[1], [0], [0], [1], [0, 0, 1, 1], [], []>} : vector<8x32xf32>, vector<32x128xf32>, vector<8x128xf32> -> vector<8x128xf32>
    %11 = arith.addf %9, %10 : vector<8x128xf32>
    %12 = math.tanh %11 : vector<8x128xf32>
    %cst_10 = arith.constant 5.000000e-01 : f32
    %13 = vector.broadcast %cst_10 : f32 to vector<8x128xf32>
    %14 = arith.mulf %13, %12 : vector<8x128xf32>
    %cst_11 = arith.constant 5.000000e-01 : f32
    %15 = vector.broadcast %cst_11 : f32 to vector<8x128xf32>
    %16 = arith.addf %14, %15 : vector<8x128xf32>
    %17 = vector.extract_strided_slice %16 {offsets = [0, 0], sizes = [8, 32], strides = [1, 1]} : vector<8x128xf32> to vector<8x32xf32>
    %18 = vector.extract_strided_slice %16 {offsets = [0, 32], sizes = [8, 32], strides = [1, 1]} : vector<8x128xf32> to vector<8x32xf32>
    %19 = vector.extract_strided_slice %16 {offsets = [0, 64], sizes = [8, 32], strides = [1, 1]} : vector<8x128xf32> to vector<8x32xf32>
    %20 = vector.extract_strided_slice %12 {offsets = [0, 96], sizes = [8, 32], strides = [1, 1]} : vector<8x128xf32> to vector<8x32xf32>
    %21 = arith.mulf %18, %8 : vector<8x32xf32>
    %22 = arith.mulf %17, %20 : vector<8x32xf32>
    %23 = arith.addf %21, %22 : vector<8x32xf32>
    %24 = math.tanh %23 : vector<8x32xf32>
    %25 = arith.mulf %19, %24 : vector<8x32xf32>
    %26 = vector.extract_strided_slice %5 {offsets = [8, 0], sizes = [8, 128], strides = [1, 1]} : vector<128x128xf32> to vector<8x128xf32>
    %cst_12 = arith.constant dense<0.000000e+00> : vector<8x128xf32>
    %27 = tpu.matmul %25, %6, %cst_12 {dimension_numbers = #tpu.dot_dimension_numbers<[1], [0], [0], [1], [0, 0, 1, 1], [], []>} : vector<8x32xf32>, vector<32x128xf32>, vector<8x128xf32> -> vector<8x128xf32>
    %28 = arith.addf %26, %27 : vector<8x128xf32>
    %29 = math.tanh %28 : vector<8x128xf32>
    %cst_13 = arith.constant 5.000000e-01 : f32
    %30 = vector.broadcast %cst_13 : f32 to vector<8x128xf32>
    %31 = arith.mulf %30, %29 : vector<8x128xf32>
    %cst_14 = arith.constant 5.000000e-01 : f32
    %32 = vector.broadcast %cst_14 : f32 to vector<8x128xf32>
    %33 = arith.addf %31, %32 : vector<8x128xf32>
    %34 = vector.extract_strided_slice %33 {offsets = [0, 0], sizes = [8, 32], strides = [1, 1]} : vector<8x128xf32> to vector<8x32xf32>
    %35 = vector.extract_strided_slice %33 {offsets = [0, 32], sizes = [8, 32], strides = [1, 1]} : vector<8x128xf32> to vector<8x32xf32>
    %36 = vector.extract_strided_slice %33 {offsets = [0, 64], sizes = [8, 32], strides = [1, 1]} : vector<8x128xf32> to vector<8x32xf32>
    %37 = vector.extract_strided_slice %29 {offsets = [0, 96], sizes = [8, 32], strides = [1, 1]} : vector<8x128xf32> to vector<8x32xf32>
    %38 = arith.mulf %35, %23 : vector<8x32xf32>
    %39 = arith.mulf %34, %37 : vector<8x32xf32>
    %40 = arith.addf %38, %39 : vector<8x32xf32>
    %41 = math.tanh %40 : vector<8x32xf32>
    %42 = arith.mulf %36, %41 : vector<8x32xf32>
    %43 = vector.extract_strided_slice %5 {offsets = [16, 0], sizes = [8, 128], strides = [1, 1]} : vector<128x128xf32> to vector<8x128xf32>
    %cst_15 = arith.constant dense<0.000000e+00> : vector<8x128xf32>
    %44 = tpu.matmul %42, %6, %cst_15 {dimension_numbers = #tpu.dot_dimension_numbers<[1], [0], [0], [1], [0, 0, 1, 1], [], []>} : vector<8x32xf32>, vector<32x128xf32>, vector<8x128xf32> -> vector<8x128xf32>
    %45 = arith.addf %43, %44 : vector<8x128xf32>
    %46 = math.tanh %45 : vector<8x128xf32>
    %cst_16 = arith.constant 5.000000e-01 : f32
    %47 = vector.broadcast %cst_16 : f32 to vector<8x128xf32>
    %48 = arith.mulf %47, %46 : vector<8x128xf32>
    %cst_17 = arith.constant 5.000000e-01 : f32
    %49 = vector.broadcast %cst_17 : f32 to vector<8x128xf32>
    %50 = arith.addf %48, %49 : vector<8x128xf32>
    %51 = vector.extract_strided_slice %50 {offsets = [0, 0], sizes = [8, 32], strides = [1, 1]} : vector<8x128xf32> to vector<8x32xf32>
    %52 = vector.extract_strided_slice %50 {offsets = [0, 32], sizes = [8, 32], strides = [1, 1]} : vector<8x128xf32> to vector<8x32xf32>
    %53 = vector.extract_strided_slice %50 {offsets = [0, 64], sizes = [8, 32], strides = [1, 1]} : vector<8x128xf32> to vector<8x32xf32>
    %54 = vector.extract_strided_slice %46 {offsets = [0, 96], sizes = [8, 32], strides = [1, 1]} : vector<8x128xf32> to vector<8x32xf32>
    %55 = arith.mulf %52, %40 : vector<8x32xf32>
    %56 = arith.mulf %51, %54 : vector<8x32xf32>
    %57 = arith.addf %55, %56 : vector<8x32xf32>
    %58 = math.tanh %57 : vector<8x32xf32>
    %59 = arith.mulf %53, %58 : vector<8x32xf32>
    %60 = vector.extract_strided_slice %5 {offsets = [24, 0], sizes = [8, 128], strides = [1, 1]} : vector<128x128xf32> to vector<8x128xf32>
    %cst_18 = arith.constant dense<0.000000e+00> : vector<8x128xf32>
    %61 = tpu.matmul %59, %6, %cst_18 {dimension_numbers = #tpu.dot_dimension_numbers<[1], [0], [0], [1], [0, 0, 1, 1], [], []>} : vector<8x32xf32>, vector<32x128xf32>, vector<8x128xf32> -> vector<8x128xf32>
    %62 = arith.addf %60, %61 : vector<8x128xf32>
    %63 = math.tanh %62 : vector<8x128xf32>
    %cst_19 = arith.constant 5.000000e-01 : f32
    %64 = vector.broadcast %cst_19 : f32 to vector<8x128xf32>
    %65 = arith.mulf %64, %63 : vector<8x128xf32>
    %cst_20 = arith.constant 5.000000e-01 : f32
    %66 = vector.broadcast %cst_20 : f32 to vector<8x128xf32>
    %67 = arith.addf %65, %66 : vector<8x128xf32>
    %68 = vector.extract_strided_slice %67 {offsets = [0, 0], sizes = [8, 32], strides = [1, 1]} : vector<8x128xf32> to vector<8x32xf32>
    %69 = vector.extract_strided_slice %67 {offsets = [0, 32], sizes = [8, 32], strides = [1, 1]} : vector<8x128xf32> to vector<8x32xf32>
    %70 = vector.extract_strided_slice %67 {offsets = [0, 64], sizes = [8, 32], strides = [1, 1]} : vector<8x128xf32> to vector<8x32xf32>
    %71 = vector.extract_strided_slice %63 {offsets = [0, 96], sizes = [8, 32], strides = [1, 1]} : vector<8x128xf32> to vector<8x32xf32>
    %72 = arith.mulf %69, %57 : vector<8x32xf32>
    %73 = arith.mulf %68, %71 : vector<8x32xf32>
    %74 = arith.addf %72, %73 : vector<8x32xf32>
    %75 = math.tanh %74 : vector<8x32xf32>
    %76 = arith.mulf %70, %75 : vector<8x32xf32>
    %77 = vector.extract_strided_slice %5 {offsets = [32, 0], sizes = [8, 128], strides = [1, 1]} : vector<128x128xf32> to vector<8x128xf32>
    %cst_21 = arith.constant dense<0.000000e+00> : vector<8x128xf32>
    %78 = tpu.matmul %76, %6, %cst_21 {dimension_numbers = #tpu.dot_dimension_numbers<[1], [0], [0], [1], [0, 0, 1, 1], [], []>} : vector<8x32xf32>, vector<32x128xf32>, vector<8x128xf32> -> vector<8x128xf32>
    %79 = arith.addf %77, %78 : vector<8x128xf32>
    %80 = math.tanh %79 : vector<8x128xf32>
    %cst_22 = arith.constant 5.000000e-01 : f32
    %81 = vector.broadcast %cst_22 : f32 to vector<8x128xf32>
    %82 = arith.mulf %81, %80 : vector<8x128xf32>
    %cst_23 = arith.constant 5.000000e-01 : f32
    %83 = vector.broadcast %cst_23 : f32 to vector<8x128xf32>
    %84 = arith.addf %82, %83 : vector<8x128xf32>
    %85 = vector.extract_strided_slice %84 {offsets = [0, 0], sizes = [8, 32], strides = [1, 1]} : vector<8x128xf32> to vector<8x32xf32>
    %86 = vector.extract_strided_slice %84 {offsets = [0, 32], sizes = [8, 32], strides = [1, 1]} : vector<8x128xf32> to vector<8x32xf32>
    %87 = vector.extract_strided_slice %84 {offsets = [0, 64], sizes = [8, 32], strides = [1, 1]} : vector<8x128xf32> to vector<8x32xf32>
    %88 = vector.extract_strided_slice %80 {offsets = [0, 96], sizes = [8, 32], strides = [1, 1]} : vector<8x128xf32> to vector<8x32xf32>
    %89 = arith.mulf %86, %74 : vector<8x32xf32>
    %90 = arith.mulf %85, %88 : vector<8x32xf32>
    %91 = arith.addf %89, %90 : vector<8x32xf32>
    %92 = math.tanh %91 : vector<8x32xf32>
    %93 = arith.mulf %87, %92 : vector<8x32xf32>
    %94 = vector.extract_strided_slice %5 {offsets = [40, 0], sizes = [8, 128], strides = [1, 1]} : vector<128x128xf32> to vector<8x128xf32>
    %cst_24 = arith.constant dense<0.000000e+00> : vector<8x128xf32>
    %95 = tpu.matmul %93, %6, %cst_24 {dimension_numbers = #tpu.dot_dimension_numbers<[1], [0], [0], [1], [0, 0, 1, 1], [], []>} : vector<8x32xf32>, vector<32x128xf32>, vector<8x128xf32> -> vector<8x128xf32>
    %96 = arith.addf %94, %95 : vector<8x128xf32>
    %97 = math.tanh %96 : vector<8x128xf32>
    %cst_25 = arith.constant 5.000000e-01 : f32
    %98 = vector.broadcast %cst_25 : f32 to vector<8x128xf32>
    %99 = arith.mulf %98, %97 : vector<8x128xf32>
    %cst_26 = arith.constant 5.000000e-01 : f32
    %100 = vector.broadcast %cst_26 : f32 to vector<8x128xf32>
    %101 = arith.addf %99, %100 : vector<8x128xf32>
    %102 = vector.extract_strided_slice %101 {offsets = [0, 0], sizes = [8, 32], strides = [1, 1]} : vector<8x128xf32> to vector<8x32xf32>
    %103 = vector.extract_strided_slice %101 {offsets = [0, 32], sizes = [8, 32], strides = [1, 1]} : vector<8x128xf32> to vector<8x32xf32>
    %104 = vector.extract_strided_slice %101 {offsets = [0, 64], sizes = [8, 32], strides = [1, 1]} : vector<8x128xf32> to vector<8x32xf32>
    %105 = vector.extract_strided_slice %97 {offsets = [0, 96], sizes = [8, 32], strides = [1, 1]} : vector<8x128xf32> to vector<8x32xf32>
    %106 = arith.mulf %103, %91 : vector<8x32xf32>
    %107 = arith.mulf %102, %105 : vector<8x32xf32>
    %108 = arith.addf %106, %107 : vector<8x32xf32>
    %109 = math.tanh %108 : vector<8x32xf32>
    %110 = arith.mulf %104, %109 : vector<8x32xf32>
    %111 = vector.extract_strided_slice %5 {offsets = [48, 0], sizes = [8, 128], strides = [1, 1]} : vector<128x128xf32> to vector<8x128xf32>
    %cst_27 = arith.constant dense<0.000000e+00> : vector<8x128xf32>
    %112 = tpu.matmul %110, %6, %cst_27 {dimension_numbers = #tpu.dot_dimension_numbers<[1], [0], [0], [1], [0, 0, 1, 1], [], []>} : vector<8x32xf32>, vector<32x128xf32>, vector<8x128xf32> -> vector<8x128xf32>
    %113 = arith.addf %111, %112 : vector<8x128xf32>
    %114 = math.tanh %113 : vector<8x128xf32>
    %cst_28 = arith.constant 5.000000e-01 : f32
    %115 = vector.broadcast %cst_28 : f32 to vector<8x128xf32>
    %116 = arith.mulf %115, %114 : vector<8x128xf32>
    %cst_29 = arith.constant 5.000000e-01 : f32
    %117 = vector.broadcast %cst_29 : f32 to vector<8x128xf32>
    %118 = arith.addf %116, %117 : vector<8x128xf32>
    %119 = vector.extract_strided_slice %118 {offsets = [0, 0], sizes = [8, 32], strides = [1, 1]} : vector<8x128xf32> to vector<8x32xf32>
    %120 = vector.extract_strided_slice %118 {offsets = [0, 32], sizes = [8, 32], strides = [1, 1]} : vector<8x128xf32> to vector<8x32xf32>
    %121 = vector.extract_strided_slice %118 {offsets = [0, 64], sizes = [8, 32], strides = [1, 1]} : vector<8x128xf32> to vector<8x32xf32>
    %122 = vector.extract_strided_slice %114 {offsets = [0, 96], sizes = [8, 32], strides = [1, 1]} : vector<8x128xf32> to vector<8x32xf32>
    %123 = arith.mulf %120, %108 : vector<8x32xf32>
    %124 = arith.mulf %119, %122 : vector<8x32xf32>
    %125 = arith.addf %123, %124 : vector<8x32xf32>
    %126 = math.tanh %125 : vector<8x32xf32>
    %127 = arith.mulf %121, %126 : vector<8x32xf32>
    %128 = vector.extract_strided_slice %5 {offsets = [56, 0], sizes = [8, 128], strides = [1, 1]} : vector<128x128xf32> to vector<8x128xf32>
    %cst_30 = arith.constant dense<0.000000e+00> : vector<8x128xf32>
    %129 = tpu.matmul %127, %6, %cst_30 {dimension_numbers = #tpu.dot_dimension_numbers<[1], [0], [0], [1], [0, 0, 1, 1], [], []>} : vector<8x32xf32>, vector<32x128xf32>, vector<8x128xf32> -> vector<8x128xf32>
    %130 = arith.addf %128, %129 : vector<8x128xf32>
    %131 = math.tanh %130 : vector<8x128xf32>
    %cst_31 = arith.constant 5.000000e-01 : f32
    %132 = vector.broadcast %cst_31 : f32 to vector<8x128xf32>
    %133 = arith.mulf %132, %131 : vector<8x128xf32>
    %cst_32 = arith.constant 5.000000e-01 : f32
    %134 = vector.broadcast %cst_32 : f32 to vector<8x128xf32>
    %135 = arith.addf %133, %134 : vector<8x128xf32>
    %136 = vector.extract_strided_slice %135 {offsets = [0, 0], sizes = [8, 32], strides = [1, 1]} : vector<8x128xf32> to vector<8x32xf32>
    %137 = vector.extract_strided_slice %135 {offsets = [0, 32], sizes = [8, 32], strides = [1, 1]} : vector<8x128xf32> to vector<8x32xf32>
    %138 = vector.extract_strided_slice %135 {offsets = [0, 64], sizes = [8, 32], strides = [1, 1]} : vector<8x128xf32> to vector<8x32xf32>
    %139 = vector.extract_strided_slice %131 {offsets = [0, 96], sizes = [8, 32], strides = [1, 1]} : vector<8x128xf32> to vector<8x32xf32>
    %140 = arith.mulf %137, %125 : vector<8x32xf32>
    %141 = arith.mulf %136, %139 : vector<8x32xf32>
    %142 = arith.addf %140, %141 : vector<8x32xf32>
    %143 = math.tanh %142 : vector<8x32xf32>
    %144 = arith.mulf %138, %143 : vector<8x32xf32>
    %145 = vector.extract_strided_slice %5 {offsets = [64, 0], sizes = [8, 128], strides = [1, 1]} : vector<128x128xf32> to vector<8x128xf32>
    %cst_33 = arith.constant dense<0.000000e+00> : vector<8x128xf32>
    %146 = tpu.matmul %144, %6, %cst_33 {dimension_numbers = #tpu.dot_dimension_numbers<[1], [0], [0], [1], [0, 0, 1, 1], [], []>} : vector<8x32xf32>, vector<32x128xf32>, vector<8x128xf32> -> vector<8x128xf32>
    %147 = arith.addf %145, %146 : vector<8x128xf32>
    %148 = math.tanh %147 : vector<8x128xf32>
    %cst_34 = arith.constant 5.000000e-01 : f32
    %149 = vector.broadcast %cst_34 : f32 to vector<8x128xf32>
    %150 = arith.mulf %149, %148 : vector<8x128xf32>
    %cst_35 = arith.constant 5.000000e-01 : f32
    %151 = vector.broadcast %cst_35 : f32 to vector<8x128xf32>
    %152 = arith.addf %150, %151 : vector<8x128xf32>
    %153 = vector.extract_strided_slice %152 {offsets = [0, 0], sizes = [8, 32], strides = [1, 1]} : vector<8x128xf32> to vector<8x32xf32>
    %154 = vector.extract_strided_slice %152 {offsets = [0, 32], sizes = [8, 32], strides = [1, 1]} : vector<8x128xf32> to vector<8x32xf32>
    %155 = vector.extract_strided_slice %152 {offsets = [0, 64], sizes = [8, 32], strides = [1, 1]} : vector<8x128xf32> to vector<8x32xf32>
    %156 = vector.extract_strided_slice %148 {offsets = [0, 96], sizes = [8, 32], strides = [1, 1]} : vector<8x128xf32> to vector<8x32xf32>
    %157 = arith.mulf %154, %142 : vector<8x32xf32>
    %158 = arith.mulf %153, %156 : vector<8x32xf32>
    %159 = arith.addf %157, %158 : vector<8x32xf32>
    %160 = math.tanh %159 : vector<8x32xf32>
    %161 = arith.mulf %155, %160 : vector<8x32xf32>
    %162 = vector.extract_strided_slice %5 {offsets = [72, 0], sizes = [8, 128], strides = [1, 1]} : vector<128x128xf32> to vector<8x128xf32>
    %cst_36 = arith.constant dense<0.000000e+00> : vector<8x128xf32>
    %163 = tpu.matmul %161, %6, %cst_36 {dimension_numbers = #tpu.dot_dimension_numbers<[1], [0], [0], [1], [0, 0, 1, 1], [], []>} : vector<8x32xf32>, vector<32x128xf32>, vector<8x128xf32> -> vector<8x128xf32>
    %164 = arith.addf %162, %163 : vector<8x128xf32>
    %165 = math.tanh %164 : vector<8x128xf32>
    %cst_37 = arith.constant 5.000000e-01 : f32
    %166 = vector.broadcast %cst_37 : f32 to vector<8x128xf32>
    %167 = arith.mulf %166, %165 : vector<8x128xf32>
    %cst_38 = arith.constant 5.000000e-01 : f32
    %168 = vector.broadcast %cst_38 : f32 to vector<8x128xf32>
    %169 = arith.addf %167, %168 : vector<8x128xf32>
    %170 = vector.extract_strided_slice %169 {offsets = [0, 0], sizes = [8, 32], strides = [1, 1]} : vector<8x128xf32> to vector<8x32xf32>
    %171 = vector.extract_strided_slice %169 {offsets = [0, 32], sizes = [8, 32], strides = [1, 1]} : vector<8x128xf32> to vector<8x32xf32>
    %172 = vector.extract_strided_slice %169 {offsets = [0, 64], sizes = [8, 32], strides = [1, 1]} : vector<8x128xf32> to vector<8x32xf32>
    %173 = vector.extract_strided_slice %165 {offsets = [0, 96], sizes = [8, 32], strides = [1, 1]} : vector<8x128xf32> to vector<8x32xf32>
    %174 = arith.mulf %171, %159 : vector<8x32xf32>
    %175 = arith.mulf %170, %173 : vector<8x32xf32>
    %176 = arith.addf %174, %175 : vector<8x32xf32>
    %177 = math.tanh %176 : vector<8x32xf32>
    %178 = arith.mulf %172, %177 : vector<8x32xf32>
    %179 = vector.extract_strided_slice %5 {offsets = [80, 0], sizes = [8, 128], strides = [1, 1]} : vector<128x128xf32> to vector<8x128xf32>
    %cst_39 = arith.constant dense<0.000000e+00> : vector<8x128xf32>
    %180 = tpu.matmul %178, %6, %cst_39 {dimension_numbers = #tpu.dot_dimension_numbers<[1], [0], [0], [1], [0, 0, 1, 1], [], []>} : vector<8x32xf32>, vector<32x128xf32>, vector<8x128xf32> -> vector<8x128xf32>
    %181 = arith.addf %179, %180 : vector<8x128xf32>
    %182 = math.tanh %181 : vector<8x128xf32>
    %cst_40 = arith.constant 5.000000e-01 : f32
    %183 = vector.broadcast %cst_40 : f32 to vector<8x128xf32>
    %184 = arith.mulf %183, %182 : vector<8x128xf32>
    %cst_41 = arith.constant 5.000000e-01 : f32
    %185 = vector.broadcast %cst_41 : f32 to vector<8x128xf32>
    %186 = arith.addf %184, %185 : vector<8x128xf32>
    %187 = vector.extract_strided_slice %186 {offsets = [0, 0], sizes = [8, 32], strides = [1, 1]} : vector<8x128xf32> to vector<8x32xf32>
    %188 = vector.extract_strided_slice %186 {offsets = [0, 32], sizes = [8, 32], strides = [1, 1]} : vector<8x128xf32> to vector<8x32xf32>
    %189 = vector.extract_strided_slice %186 {offsets = [0, 64], sizes = [8, 32], strides = [1, 1]} : vector<8x128xf32> to vector<8x32xf32>
    %190 = vector.extract_strided_slice %182 {offsets = [0, 96], sizes = [8, 32], strides = [1, 1]} : vector<8x128xf32> to vector<8x32xf32>
    %191 = arith.mulf %188, %176 : vector<8x32xf32>
    %192 = arith.mulf %187, %190 : vector<8x32xf32>
    %193 = arith.addf %191, %192 : vector<8x32xf32>
    %194 = math.tanh %193 : vector<8x32xf32>
    %195 = arith.mulf %189, %194 : vector<8x32xf32>
    %196 = vector.extract_strided_slice %5 {offsets = [88, 0], sizes = [8, 128], strides = [1, 1]} : vector<128x128xf32> to vector<8x128xf32>
    %cst_42 = arith.constant dense<0.000000e+00> : vector<8x128xf32>
    %197 = tpu.matmul %195, %6, %cst_42 {dimension_numbers = #tpu.dot_dimension_numbers<[1], [0], [0], [1], [0, 0, 1, 1], [], []>} : vector<8x32xf32>, vector<32x128xf32>, vector<8x128xf32> -> vector<8x128xf32>
    %198 = arith.addf %196, %197 : vector<8x128xf32>
    %199 = math.tanh %198 : vector<8x128xf32>
    %cst_43 = arith.constant 5.000000e-01 : f32
    %200 = vector.broadcast %cst_43 : f32 to vector<8x128xf32>
    %201 = arith.mulf %200, %199 : vector<8x128xf32>
    %cst_44 = arith.constant 5.000000e-01 : f32
    %202 = vector.broadcast %cst_44 : f32 to vector<8x128xf32>
    %203 = arith.addf %201, %202 : vector<8x128xf32>
    %204 = vector.extract_strided_slice %203 {offsets = [0, 0], sizes = [8, 32], strides = [1, 1]} : vector<8x128xf32> to vector<8x32xf32>
    %205 = vector.extract_strided_slice %203 {offsets = [0, 32], sizes = [8, 32], strides = [1, 1]} : vector<8x128xf32> to vector<8x32xf32>
    %206 = vector.extract_strided_slice %203 {offsets = [0, 64], sizes = [8, 32], strides = [1, 1]} : vector<8x128xf32> to vector<8x32xf32>
    %207 = vector.extract_strided_slice %199 {offsets = [0, 96], sizes = [8, 32], strides = [1, 1]} : vector<8x128xf32> to vector<8x32xf32>
    %208 = arith.mulf %205, %193 : vector<8x32xf32>
    %209 = arith.mulf %204, %207 : vector<8x32xf32>
    %210 = arith.addf %208, %209 : vector<8x32xf32>
    %211 = math.tanh %210 : vector<8x32xf32>
    %212 = arith.mulf %206, %211 : vector<8x32xf32>
    %213 = vector.extract_strided_slice %5 {offsets = [96, 0], sizes = [8, 128], strides = [1, 1]} : vector<128x128xf32> to vector<8x128xf32>
    %cst_45 = arith.constant dense<0.000000e+00> : vector<8x128xf32>
    %214 = tpu.matmul %212, %6, %cst_45 {dimension_numbers = #tpu.dot_dimension_numbers<[1], [0], [0], [1], [0, 0, 1, 1], [], []>} : vector<8x32xf32>, vector<32x128xf32>, vector<8x128xf32> -> vector<8x128xf32>
    %215 = arith.addf %213, %214 : vector<8x128xf32>
    %216 = math.tanh %215 : vector<8x128xf32>
    %cst_46 = arith.constant 5.000000e-01 : f32
    %217 = vector.broadcast %cst_46 : f32 to vector<8x128xf32>
    %218 = arith.mulf %217, %216 : vector<8x128xf32>
    %cst_47 = arith.constant 5.000000e-01 : f32
    %219 = vector.broadcast %cst_47 : f32 to vector<8x128xf32>
    %220 = arith.addf %218, %219 : vector<8x128xf32>
    %221 = vector.extract_strided_slice %220 {offsets = [0, 0], sizes = [8, 32], strides = [1, 1]} : vector<8x128xf32> to vector<8x32xf32>
    %222 = vector.extract_strided_slice %220 {offsets = [0, 32], sizes = [8, 32], strides = [1, 1]} : vector<8x128xf32> to vector<8x32xf32>
    %223 = vector.extract_strided_slice %220 {offsets = [0, 64], sizes = [8, 32], strides = [1, 1]} : vector<8x128xf32> to vector<8x32xf32>
    %224 = vector.extract_strided_slice %216 {offsets = [0, 96], sizes = [8, 32], strides = [1, 1]} : vector<8x128xf32> to vector<8x32xf32>
    %225 = arith.mulf %222, %210 : vector<8x32xf32>
    %226 = arith.mulf %221, %224 : vector<8x32xf32>
    %227 = arith.addf %225, %226 : vector<8x32xf32>
    %228 = math.tanh %227 : vector<8x32xf32>
    %229 = arith.mulf %223, %228 : vector<8x32xf32>
    %230 = vector.extract_strided_slice %5 {offsets = [104, 0], sizes = [8, 128], strides = [1, 1]} : vector<128x128xf32> to vector<8x128xf32>
    %cst_48 = arith.constant dense<0.000000e+00> : vector<8x128xf32>
    %231 = tpu.matmul %229, %6, %cst_48 {dimension_numbers = #tpu.dot_dimension_numbers<[1], [0], [0], [1], [0, 0, 1, 1], [], []>} : vector<8x32xf32>, vector<32x128xf32>, vector<8x128xf32> -> vector<8x128xf32>
    %232 = arith.addf %230, %231 : vector<8x128xf32>
    %233 = math.tanh %232 : vector<8x128xf32>
    %cst_49 = arith.constant 5.000000e-01 : f32
    %234 = vector.broadcast %cst_49 : f32 to vector<8x128xf32>
    %235 = arith.mulf %234, %233 : vector<8x128xf32>
    %cst_50 = arith.constant 5.000000e-01 : f32
    %236 = vector.broadcast %cst_50 : f32 to vector<8x128xf32>
    %237 = arith.addf %235, %236 : vector<8x128xf32>
    %238 = vector.extract_strided_slice %237 {offsets = [0, 0], sizes = [8, 32], strides = [1, 1]} : vector<8x128xf32> to vector<8x32xf32>
    %239 = vector.extract_strided_slice %237 {offsets = [0, 32], sizes = [8, 32], strides = [1, 1]} : vector<8x128xf32> to vector<8x32xf32>
    %240 = vector.extract_strided_slice %237 {offsets = [0, 64], sizes = [8, 32], strides = [1, 1]} : vector<8x128xf32> to vector<8x32xf32>
    %241 = vector.extract_strided_slice %233 {offsets = [0, 96], sizes = [8, 32], strides = [1, 1]} : vector<8x128xf32> to vector<8x32xf32>
    %242 = arith.mulf %239, %227 : vector<8x32xf32>
    %243 = arith.mulf %238, %241 : vector<8x32xf32>
    %244 = arith.addf %242, %243 : vector<8x32xf32>
    %245 = math.tanh %244 : vector<8x32xf32>
    %246 = arith.mulf %240, %245 : vector<8x32xf32>
    %247 = vector.extract_strided_slice %5 {offsets = [112, 0], sizes = [8, 128], strides = [1, 1]} : vector<128x128xf32> to vector<8x128xf32>
    %cst_51 = arith.constant dense<0.000000e+00> : vector<8x128xf32>
    %248 = tpu.matmul %246, %6, %cst_51 {dimension_numbers = #tpu.dot_dimension_numbers<[1], [0], [0], [1], [0, 0, 1, 1], [], []>} : vector<8x32xf32>, vector<32x128xf32>, vector<8x128xf32> -> vector<8x128xf32>
    %249 = arith.addf %247, %248 : vector<8x128xf32>
    %250 = math.tanh %249 : vector<8x128xf32>
    %cst_52 = arith.constant 5.000000e-01 : f32
    %251 = vector.broadcast %cst_52 : f32 to vector<8x128xf32>
    %252 = arith.mulf %251, %250 : vector<8x128xf32>
    %cst_53 = arith.constant 5.000000e-01 : f32
    %253 = vector.broadcast %cst_53 : f32 to vector<8x128xf32>
    %254 = arith.addf %252, %253 : vector<8x128xf32>
    %255 = vector.extract_strided_slice %254 {offsets = [0, 0], sizes = [8, 32], strides = [1, 1]} : vector<8x128xf32> to vector<8x32xf32>
    %256 = vector.extract_strided_slice %254 {offsets = [0, 32], sizes = [8, 32], strides = [1, 1]} : vector<8x128xf32> to vector<8x32xf32>
    %257 = vector.extract_strided_slice %254 {offsets = [0, 64], sizes = [8, 32], strides = [1, 1]} : vector<8x128xf32> to vector<8x32xf32>
    %258 = vector.extract_strided_slice %250 {offsets = [0, 96], sizes = [8, 32], strides = [1, 1]} : vector<8x128xf32> to vector<8x32xf32>
    %259 = arith.mulf %256, %244 : vector<8x32xf32>
    %260 = arith.mulf %255, %258 : vector<8x32xf32>
    %261 = arith.addf %259, %260 : vector<8x32xf32>
    %262 = math.tanh %261 : vector<8x32xf32>
    %263 = arith.mulf %257, %262 : vector<8x32xf32>
    %264 = vector.extract_strided_slice %5 {offsets = [120, 0], sizes = [8, 128], strides = [1, 1]} : vector<128x128xf32> to vector<8x128xf32>
    %cst_54 = arith.constant dense<0.000000e+00> : vector<8x128xf32>
    %265 = tpu.matmul %263, %6, %cst_54 {dimension_numbers = #tpu.dot_dimension_numbers<[1], [0], [0], [1], [0, 0, 1, 1], [], []>} : vector<8x32xf32>, vector<32x128xf32>, vector<8x128xf32> -> vector<8x128xf32>
    %266 = arith.addf %264, %265 : vector<8x128xf32>
    %267 = math.tanh %266 : vector<8x128xf32>
    %cst_55 = arith.constant 5.000000e-01 : f32
    %268 = vector.broadcast %cst_55 : f32 to vector<8x128xf32>
    %269 = arith.mulf %268, %267 : vector<8x128xf32>
    %cst_56 = arith.constant 5.000000e-01 : f32
    %270 = vector.broadcast %cst_56 : f32 to vector<8x128xf32>
    %271 = arith.addf %269, %270 : vector<8x128xf32>
    %272 = vector.extract_strided_slice %271 {offsets = [0, 0], sizes = [8, 32], strides = [1, 1]} : vector<8x128xf32> to vector<8x32xf32>
    %273 = vector.extract_strided_slice %271 {offsets = [0, 32], sizes = [8, 32], strides = [1, 1]} : vector<8x128xf32> to vector<8x32xf32>
    %274 = vector.extract_strided_slice %271 {offsets = [0, 64], sizes = [8, 32], strides = [1, 1]} : vector<8x128xf32> to vector<8x32xf32>
    %275 = vector.extract_strided_slice %267 {offsets = [0, 96], sizes = [8, 32], strides = [1, 1]} : vector<8x128xf32> to vector<8x32xf32>
    %276 = arith.mulf %273, %261 : vector<8x32xf32>
    %277 = arith.mulf %272, %275 : vector<8x32xf32>
    %278 = arith.addf %276, %277 : vector<8x32xf32>
    %279 = math.tanh %278 : vector<8x32xf32>
    %280 = arith.mulf %274, %279 : vector<8x32xf32>
    %cst_57 = arith.constant 0.000000e+00 : f32
    %281 = vector.broadcast %cst_57 : f32 to vector<8x32xf32>
    %282 = arith.maximumf %280, %281 : vector<8x32xf32>
    %c0_58 = arith.constant 0 : index
    %c0_59 = arith.constant 0 : index
    %283 = vector.load %arg4[%c0_58, %c0_59] : memref<32x128xf32, #tpu.memory_space<vmem>>, vector<32x128xf32>
    %cst_60 = arith.constant dense<0.000000e+00> : vector<8x128xf32>
    %284 = tpu.matmul %282, %283, %cst_60 {dimension_numbers = #tpu.dot_dimension_numbers<[1], [0], [0], [1], [0, 0, 1, 1], [], []>} : vector<8x32xf32>, vector<32x128xf32>, vector<8x128xf32> -> vector<8x128xf32>
    %c0_61 = arith.constant 0 : index
    %c0_62 = arith.constant 0 : index
    %285 = vector.load %arg5[%c0_61, %c0_62] : memref<1x128xf32, #tpu.memory_space<vmem>>, vector<1x128xf32>
    %286 = vector.broadcast %285 : vector<1x128xf32> to vector<8x128xf32>
    %287 = arith.addf %284, %286 : vector<8x128xf32>
    %cst_63 = arith.constant 0.000000e+00 : f32
    %288 = vector.broadcast %cst_63 : f32 to vector<8x128xf32>
    %289 = arith.maximumf %287, %288 : vector<8x128xf32>
    %c0_64 = arith.constant 0 : index
    %c0_65 = arith.constant 0 : index
    %290 = vector.load %arg6[%c0_64, %c0_65] : memref<128x64xf32, #tpu.memory_space<vmem>>, vector<128x64xf32>
    %cst_66 = arith.constant dense<0.000000e+00> : vector<8x64xf32>
    %291 = tpu.matmul %289, %290, %cst_66 {dimension_numbers = #tpu.dot_dimension_numbers<[1], [0], [0], [1], [0, 0, 1, 1], [], []>} : vector<8x128xf32>, vector<128x64xf32>, vector<8x64xf32> -> vector<8x64xf32>
    %c0_67 = arith.constant 0 : index
    %c0_68 = arith.constant 0 : index
    %292 = vector.load %arg7[%c0_67, %c0_68] : memref<1x64xf32, #tpu.memory_space<vmem>>, vector<1x64xf32>
    %293 = vector.broadcast %292 : vector<1x64xf32> to vector<8x64xf32>
    %294 = arith.addf %291, %293 : vector<8x64xf32>
    %cst_69 = arith.constant 0.000000e+00 : f32
    %295 = vector.broadcast %cst_69 : f32 to vector<8x64xf32>
    %296 = arith.maximumf %294, %295 : vector<8x64xf32>
    %c0_70 = arith.constant 0 : index
    %c0_71 = arith.constant 0 : index
    %297 = vector.load %arg8[%c0_70, %c0_71] : memref<64x2xf32, #tpu.memory_space<vmem>>, vector<64x2xf32>
    %cst_72 = arith.constant dense<0.000000e+00> : vector<8x2xf32>
    %298 = tpu.matmul %296, %297, %cst_72 {dimension_numbers = #tpu.dot_dimension_numbers<[1], [0], [0], [1], [0, 0, 1, 1], [], []>} : vector<8x64xf32>, vector<64x2xf32>, vector<8x2xf32> -> vector<8x2xf32>
    %c0_73 = arith.constant 0 : index
    %c0_74 = arith.constant 0 : index
    %299 = vector.load %arg9[%c0_73, %c0_74] : memref<1x2xf32, #tpu.memory_space<vmem>>, vector<1x2xf32>
    %300 = vector.broadcast %299 : vector<1x2xf32> to vector<8x2xf32>
    %301 = arith.addf %298, %300 : vector<8x2xf32>
    %302 = vector.extract_strided_slice %301 {offsets = [0, 0], sizes = [8, 1], strides = [1, 1]} : vector<8x2xf32> to vector<8x1xf32>
    %303 = vector.extract_strided_slice %301 {offsets = [0, 1], sizes = [8, 1], strides = [1, 1]} : vector<8x2xf32> to vector<8x1xf32>
    %304 = arith.subf %302, %303 : vector<8x1xf32>
    %305 = arith.negf %304 : vector<8x1xf32>
    %306 = math.exp %305 : vector<8x1xf32>
    %cst_75 = arith.constant 1.000000e+00 : f32
    %307 = vector.broadcast %cst_75 : f32 to vector<8x1xf32>
    %308 = arith.addf %307, %306 : vector<8x1xf32>
    %309 = arith.divf %307, %308 : vector<8x1xf32>
    %cst_76 = arith.constant 1.000000e+00 : f32
    %310 = vector.broadcast %cst_76 : f32 to vector<8x1xf32>
    %311 = arith.subf %310, %309 : vector<8x1xf32>
    %312 = tpu.concatenate %309, %311 in 1 : vector<8x1xf32>, vector<8x1xf32> -> vector<8x2xf32>
    %c0_77 = arith.constant 0 : index
    %c0_78 = arith.constant 0 : index
    %313 = vector.load %arg10[%c0_77, %c0_78] : memref<8x2xf32, #tpu.memory_space<vmem>>, vector<8x2xf32>
    tpu.vector_store %arg10[%c0_77, %c0_78], %312 {strides = array<i32>} : memref<8x2xf32, #tpu.memory_space<vmem>>, vector<8x2xf32>,
    return
  }
}

</mosaic_0001>

<llo_original>
// kernel: tpu_custom_call.1
$region0: #{tpu_custom_call.1}
  #allocation0 [shape = 'u32[]', space=smem, size = 0x4, offset = 0x4, fixed_abs, tag = 'smem constant byte address 0x4 - core index']
  #allocation1 [shape = 'u32[144,128]{1,0:T(1,128)}', space=vmem, size = 0x12000, scoped, tag = 'internal scratch']
  %s0 = inlined_call_operand.vmem [shape: f32[128,4], index: 0, kind: input, shape index: {}]
  %s1 = inlined_call_operand.vmem [shape: f32[4,128], index: 1, kind: input, shape index: {}]
  %s2 = inlined_call_operand.vmem [shape: f32[32,128], index: 2, kind: input, shape index: {}]
  %s3 = inlined_call_operand.vmem [shape: f32[1,128], index: 3, kind: input, shape index: {}]
  %s4 = inlined_call_operand.vmem [shape: f32[32,128], index: 4, kind: input, shape index: {}]
  %s5 = inlined_call_operand.vmem [shape: f32[1,128], index: 5, kind: input, shape index: {}]
  %s6 = inlined_call_operand.vmem [shape: f32[128,64], index: 6, kind: input, shape index: {}]
  %s7 = inlined_call_operand.vmem [shape: f32[1,64], index: 7, kind: input, shape index: {}]
  %s8 = inlined_call_operand.vmem [shape: f32[64,2], index: 8, kind: input, shape index: {}]
  %s9 = inlined_call_operand.vmem [shape: f32[1,2], index: 9, kind: input, shape index: {}]
  %s10 = inlined_call_operand.vmem [shape: f32[8,2], index: 10, kind: output, shape index: {}]
  %s11 = sld [smem:[#allocation0]]
  $region50: #{tpu_custom_call.1} parent=0
    _
  %s13 = ssub.s32 1, %s11
  %s14 = scalar_select 0, %s13, %s11
  // Predicated region
  $region2: #{tpu_custom_call.1} parent=0 // pred_check
    _
  $region3: #{tpu_custom_call.1} parent=0 // pred_check_branch
    %16 = sbr.rel (0) target = $region5
  $region4: #{tpu_custom_call.1} parent=0 // pred_region
    _
  $region5: #{tpu_custom_call.1} parent=0 // pred_fallthru
    _
  // Predicated region
  $region6: #{tpu_custom_call.1} parent=0 // pred_check
    _
  $region7: #{tpu_custom_call.1} parent=0 // pred_check_branch
    %18 = sbr.rel (0) target = $region9
  $region8: #{tpu_custom_call.1} parent=0 // pred_region
    _
  $region9: #{tpu_custom_call.1} parent=0 // pred_fallthru
    _
  // Predicated region
  $region10: #{tpu_custom_call.1} parent=0 // pred_check
    _
  $region11: #{tpu_custom_call.1} parent=0 // pred_check_branch
    %20 = sbr.rel (0) target = $region13
  $region12: #{tpu_custom_call.1} parent=0 // pred_region
    _
  $region13: #{tpu_custom_call.1} parent=0 // pred_fallthru
    _
  // Predicated region
  $region14: #{tpu_custom_call.1} parent=0 // pred_check
    _
  $region15: #{tpu_custom_call.1} parent=0 // pred_check_branch
    %22 = sbr.rel (0) target = $region17
  $region16: #{tpu_custom_call.1} parent=0 // pred_region
    _
  $region17: #{tpu_custom_call.1} parent=0 // pred_fallthru
    _
  // Predicated region
  $region18: #{tpu_custom_call.1} parent=0 // pred_check
    _
  $region19: #{tpu_custom_call.1} parent=0 // pred_check_branch
    %24 = sbr.rel (0) target = $region21
  $region20: #{tpu_custom_call.1} parent=0 // pred_region
    _
  $region21: #{tpu_custom_call.1} parent=0 // pred_fallthru
    _
  // Predicated region
  $region22: #{tpu_custom_call.1} parent=0 // pred_check
    _
  $region23: #{tpu_custom_call.1} parent=0 // pred_check_branch
    %26 = sbr.rel (0) target = $region25
  $region24: #{tpu_custom_call.1} parent=0 // pred_region
    _
  $region25: #{tpu_custom_call.1} parent=0 // pred_fallthru
    _
  // Predicated region
  $region26: #{tpu_custom_call.1} parent=0 // pred_check
    _
  $region27: #{tpu_custom_call.1} parent=0 // pred_check_branch
    %28 = sbr.rel (0) target = $region29
  $region28: #{tpu_custom_call.1} parent=0 // pred_region
    _
  $region29: #{tpu_custom_call.1} parent=0 // pred_fallthru
    _
  // Predicated region
  $region30: #{tpu_custom_call.1} parent=0 // pred_check
    _
  $region31: #{tpu_custom_call.1} parent=0 // pred_check_branch
    %30 = sbr.rel (0) target = $region33
  $region32: #{tpu_custom_call.1} parent=0 // pred_region
    _
  $region33: #{tpu_custom_call.1} parent=0 // pred_fallthru
    _
  // Predicated region
  $region34: #{tpu_custom_call.1} parent=0 // pred_check
    _
  $region35: #{tpu_custom_call.1} parent=0 // pred_check_branch
    %32 = sbr.rel (0) target = $region37
  $region36: #{tpu_custom_call.1} parent=0 // pred_region
    _
  $region37: #{tpu_custom_call.1} parent=0 // pred_fallthru
    _
  // Predicated region
  $region38: #{tpu_custom_call.1} parent=0 // pred_check
    _
  $region39: #{tpu_custom_call.1} parent=0 // pred_check_branch
    %34 = sbr.rel (0) target = $region41
  $region40: #{tpu_custom_call.1} parent=0 // pred_region
    _
  $region41: #{tpu_custom_call.1} parent=0 // pred_fallthru
    _
  %v35 = vld [vmem:[%s0] sm:$0xff]
  %v36 = vld [vmem:[%s0 + $0x8] sm:$0xff]
  %v37 = vld [vmem:[%s0 + $0x10] sm:$0xff]
  %v38 = vld [vmem:[%s0 + $0x18] sm:$0xff]
  %v39 = vld [vmem:[%s0 + $0x20] sm:$0xff]
  %v40 = vld [vmem:[%s0 + $0x28] sm:$0xff]
  %v41 = vld [vmem:[%s0 + $0x30] sm:$0xff]
  %v42 = vld [vmem:[%s0 + $0x38] sm:$0xff]
  %v43 = vld [vmem:[%s0 + $0x40] sm:$0xff]
  %v44 = vld [vmem:[%s0 + $0x48] sm:$0xff]
  %v45 = vld [vmem:[%s0 + $0x50] sm:$0xff]
  %v46 = vld [vmem:[%s0 + $0x58] sm:$0xff]
  %v47 = vld [vmem:[%s0 + $0x60] sm:$0xff]
  %v48 = vld [vmem:[%s0 + $0x68] sm:$0xff]
  %v49 = vld [vmem:[%s0 + $0x70] sm:$0xff]
  %v50 = vld [vmem:[%s0 + $0x78] sm:$0xff]
  %v51 = vld [vmem:[%s1] sm:$0xf]
  %v52 = vld [vmem:[%s3] sm:$0x1]
  %v54 = vlaneseq
  %v55 = vshrl.u32 %v54, 7
  %v56 = vsub.s32 0, %v55
  %v57 = vrot.slane %v52, %v56
  %vm59 = vcmask 31744
  %v61 = vsel %vm59, %v35, 0
  %v64 = vsel %vm59, %v36, 0
  %v67 = vsel %vm59, %v37, 0
  %v70 = vsel %vm59, %v38, 0
  %v73 = vsel %vm59, %v39, 0
  %v76 = vsel %vm59, %v40, 0
  %v79 = vsel %vm59, %v41, 0
  %v82 = vsel %vm59, %v42, 0
  %v85 = vsel %vm59, %v43, 0
  %v88 = vsel %vm59, %v44, 0
  %v91 = vsel %vm59, %v45, 0
  %v94 = vsel %vm59, %v46, 0
  %v97 = vsel %vm59, %v47, 0
  %v100 = vsel %vm59, %v48, 0
  %v103 = vsel %vm59, %v49, 0
  %v106 = vsel %vm59, %v50, 0
  %vm108 = vcmask 1043456
  %v110 = vsel %vm108, %v51, 0
  %112 = vmatprep.subr.mxu0 0.0
  %113 = vmatpush1.msra.mxu0 %v110
  %114 = vmatprep.subr.mxu0 0.0
  %115 = vmatpush1.msra.mxu0 0.0
  %116 = vmatprep.subr.mxu0 0.0
  %117 = vmatpush1.msra.mxu0 0.0
  %118 = vmatprep.subr.mxu0 0.0
  %119 = vmatpush1.msra.mxu0 0.0
  %120 = vmatprep.subr.mxu0 0.0
  %121 = vmatpush1.msra.mxu0 0.0
  %122 = vmatprep.subr.mxu0 0.0
  %123 = vmatpush1.msra.mxu0 0.0
  %124 = vmatprep.subr.mxu0 0.0
  %125 = vmatpush1.msra.mxu0 0.0
  %126 = vmatprep.subr.mxu0 0.0
  %127 = vmatpush1.msra.mxu0 0.0
  %128 = vmatprep.subr.mxu0 0.0
  %129 = vmatpush1.msra.mxu0 0.0
  %130 = vmatprep.subr.mxu0 0.0
  %131 = vmatpush1.msra.mxu0 0.0
  %132 = vmatprep.subr.mxu0 0.0
  %133 = vmatpush1.msra.mxu0 0.0
  %134 = vmatprep.subr.mxu0 0.0
  %135 = vmatpush1.msra.mxu0 0.0
  %136 = vmatprep.subr.mxu0 0.0
  %137 = vmatpush1.msra.mxu0 0.0
  %138 = vmatprep.subr.mxu0 0.0
  %139 = vmatpush1.msra.mxu0 0.0
  %140 = vmatprep.subr.mxu0 0.0
  %141 = vmatpush1.msra.mxu0 0.0
  %142 = vmatprep.subr.mxu0 0.0
  %143 = vmatpush1.msra.mxu0 0.0
  %144 = vmatprep.subr.mxu0 0.0
  %145 = vmatpush1.msra.mxu0 0.0
  %146 = vmatprep.subr.mxu0 0.0
  %147 = vmatpush1.msra.mxu0 0.0
  %148 = vmatprep.subr.mxu0 0.0
  %149 = vmatpush1.msra.mxu0 0.0
  %150 = vmatprep.subr.mxu0 0.0
  %151 = vmatpush1.msra.mxu0 0.0
  %152 = vmatprep.subr.mxu0 0.0
  %153 = vmatpush1.msra.mxu0 0.0
  %154 = vmatprep.subr.mxu0 0.0
  %155 = vmatpush1.msra.mxu0 0.0
  %156 = vmatprep.subr.mxu0 0.0
  %157 = vmatpush1.msra.mxu0 0.0
  %158 = vmatprep.subr.mxu0 0.0
  %159 = vmatpush1.msra.mxu0 0.0
  %160 = vmatprep.subr.mxu0 0.0
  %161 = vmatpush1.msra.mxu0 0.0
  %162 = vmatprep.subr.mxu0 0.0
  %163 = vmatpush1.msra.mxu0 0.0
  %164 = vmatprep.subr.mxu0 0.0
  %165 = vmatpush1.msra.mxu0 0.0
  %166 = vmatprep.subr.mxu0 0.0
  %167 = vmatpush1.msra.mxu0 0.0
  %168 = vmatprep.subr.mxu0 0.0
  %169 = vmatpush1.msra.mxu0 0.0
  %170 = vmatprep.subr.mxu0 0.0
  %171 = vmatpush1.msra.mxu0 0.0
  %172 = vmatprep.subr.mxu0 0.0
  %173 = vmatpush1.msra.mxu0 0.0
  %174 = vmatprep.subr.mxu0 0.0
  %175 = vmatpush1.msra.mxu0 0.0
  %176 = vmatprep.mubr.f32.mxu0 0.0
  %177 = vmatmul.mubr.f32.gmra.mrb[0].mxu0 %v61
  %v178 = vpop.f32.mrb[0].mxu0
  %v179 = vadd.f32 %v57, %v178
  %v180 = vpop.f32.mrb[0].mxu0
  %181 = vmatprep.mubr.f32.mxu0 0.0
  %182 = vmatmul.mubr.f32.gmra.mrb[0].mxu0 %v64
  %v183 = vpop.f32.mrb[0].mxu0
  %v184 = vadd.f32 %v57, %v183
  %v185 = vpop.f32.mrb[0].mxu0
  %186 = vmatprep.mubr.f32.mxu0 0.0
  %187 = vmatmul.mubr.f32.gmra.mrb[0].mxu0 %v67
  %v188 = vpop.f32.mrb[0].mxu0
  %v189 = vadd.f32 %v57, %v188
  %v190 = vpop.f32.mrb[0].mxu0
  %191 = vmatprep.mubr.f32.mxu0 0.0
  %192 = vmatmul.mubr.f32.gmra.mrb[0].mxu0 %v70
  %v193 = vpop.f32.mrb[0].mxu0
  %v194 = vadd.f32 %v57, %v193
  %v195 = vpop.f32.mrb[0].mxu0
  %196 = vmatprep.mubr.f32.mxu0 0.0
  %197 = vmatmul.mubr.f32.gmra.mrb[0].mxu0 %v73
  %v198 = vpop.f32.mrb[0].mxu0
  %v199 = vadd.f32 %v57, %v198
  %v200 = vpop.f32.mrb[0].mxu0
  %201 = vmatprep.mubr.f32.mxu0 0.0
  %202 = vmatmul.mubr.f32.gmra.mrb[0].mxu0 %v76
  %v203 = vpop.f32.mrb[0].mxu0
  %v204 = vadd.f32 %v57, %v203
  %v205 = vpop.f32.mrb[0].mxu0
  %206 = vmatprep.mubr.f32.mxu0 0.0
  %207 = vmatmul.mubr.f32.gmra.mrb[0].mxu0 %v79
  %v208 = vpop.f32.mrb[0].mxu0
  %v209 = vadd.f32 %v57, %v208
  %v210 = vpop.f32.mrb[0].mxu0
  %211 = vmatprep.mubr.f32.mxu0 0.0
  %212 = vmatmul.mubr.f32.gmra.mrb[0].mxu0 %v82
  %v213 = vpop.f32.mrb[0].mxu0
  %v214 = vadd.f32 %v57, %v213
  %v215 = vpop.f32.mrb[0].mxu0
  %216 = vmatprep.mubr.f32.mxu0 0.0
  %217 = vmatmul.mubr.f32.gmra.mrb[0].mxu0 %v85
  %v218 = vpop.f32.mrb[0].mxu0
  %v219 = vadd.f32 %v57, %v218
  %v220 = vpop.f32.mrb[0].mxu0
  %221 = vmatprep.mubr.f32.mxu0 0.0
  %222 = vmatmul.mubr.f32.gmra.mrb[0].mxu0 %v88
  %v223 = vpop.f32.mrb[0].mxu0
  %v224 = vadd.f32 %v57, %v223
  %v225 = vpop.f32.mrb[0].mxu0
  %226 = vmatprep.mubr.f32.mxu0 0.0
  %227 = vmatmul.mubr.f32.gmra.mrb[0].mxu0 %v91
  %v228 = vpop.f32.mrb[0].mxu0
  %v229 = vadd.f32 %v57, %v228
  %v230 = vpop.f32.mrb[0].mxu0
  %231 = vmatprep.mubr.f32.mxu0 0.0
  %232 = vmatmul.mubr.f32.gmra.mrb[0].mxu0 %v94
  %v233 = vpop.f32.mrb[0].mxu0
  %v234 = vadd.f32 %v57, %v233
  %v235 = vpop.f32.mrb[0].mxu0
  %236 = vmatprep.mubr.f32.mxu0 0.0
  %237 = vmatmul.mubr.f32.gmra.mrb[0].mxu0 %v97
  %v238 = vpop.f32.mrb[0].mxu0
  %v239 = vadd.f32 %v57, %v238
  %v240 = vpop.f32.mrb[0].mxu0
  %241 = vmatprep.mubr.f32.mxu0 0.0
  %242 = vmatmul.mubr.f32.gmra.mrb[0].mxu0 %v100
  %v243 = vpop.f32.mrb[0].mxu0
  %v244 = vadd.f32 %v57, %v243
  %v245 = vpop.f32.mrb[0].mxu0
  %246 = vmatprep.mubr.f32.mxu0 0.0
  %247 = vmatmul.mubr.f32.gmra.mrb[0].mxu0 %v103
  %v248 = vpop.f32.mrb[0].mxu0
  %v249 = vadd.f32 %v57, %v248
  %v250 = vpop.f32.mrb[0].mxu0
  %251 = vmatprep.mubr.f32.mxu0 0.0
  %252 = vmatmul.mubr.f32.gmra.mrb[0].mxu0 %v106
  %v253 = vpop.f32.mrb[0].mxu0
  %v254 = vadd.f32 %v57, %v253
  %v255 = vpop.f32.mrb[0].mxu0
  %256 = vdwg.mxu0
  %v257 = vld [vmem:[%s2] sm:$0xff]
  %v258 = vld [vmem:[%s2 + $0x8] sm:$0xff]
  %v259 = vld [vmem:[%s2 + $0x10] sm:$0xff]
  %v260 = vld [vmem:[%s2 + $0x18] sm:$0xff]
  %vm261 = vcmask 261120
  %v263 = vsel %vm261, 0.0, 0
  %265 = vmatprep.subr.mxu0 0.0
  %266 = vmatpush1.msra.mxu0 %v257
  %267 = vmatprep.subr.mxu0 0.0
  %268 = vmatpush1.msra.mxu0 %v258
  %269 = vmatprep.subr.mxu0 0.0
  %270 = vmatpush1.msra.mxu0 %v259
  %271 = vmatprep.subr.mxu0 0.0
  %272 = vmatpush1.msra.mxu0 %v260
  %273 = vmatprep.subr.mxu0 0.0
  %274 = vmatpush1.msra.mxu0 0.0
  %275 = vmatprep.subr.mxu0 0.0
  %276 = vmatpush1.msra.mxu0 0.0
  %277 = vmatprep.subr.mxu0 0.0
  %278 = vmatpush1.msra.mxu0 0.0
  %279 = vmatprep.subr.mxu0 0.0
  %280 = vmatpush1.msra.mxu0 0.0
  %281 = vmatprep.subr.mxu0 0.0
  %282 = vmatpush1.msra.mxu0 0.0
  %283 = vmatprep.subr.mxu0 0.0
  %284 = vmatpush1.msra.mxu0 0.0
  %285 = vmatprep.subr.mxu0 0.0
  %286 = vmatpush1.msra.mxu0 0.0
  %287 = vmatprep.subr.mxu0 0.0
  %288 = vmatpush1.msra.mxu0 0.0
  %289 = vmatprep.subr.mxu0 0.0
  %290 = vmatpush1.msra.mxu0 0.0
  %291 = vmatprep.subr.mxu0 0.0
  %292 = vmatpush1.msra.mxu0 0.0
  %293 = vmatprep.subr.mxu0 0.0
  %294 = vmatpush1.msra.mxu0 0.0
  %295 = vmatprep.subr.mxu0 0.0
  %296 = vmatpush1.msra.mxu0 0.0
  %297 = vmatprep.subr.mxu0 0.0
  %298 = vmatpush1.msra.mxu0 0.0
  %299 = vmatprep.subr.mxu0 0.0
  %300 = vmatpush1.msra.mxu0 0.0
  %301 = vmatprep.subr.mxu0 0.0
  %302 = vmatpush1.msra.mxu0 0.0
  %303 = vmatprep.subr.mxu0 0.0
  %304 = vmatpush1.msra.mxu0 0.0
  %305 = vmatprep.subr.mxu0 0.0
  %306 = vmatpush1.msra.mxu0 0.0
  %307 = vmatprep.subr.mxu0 0.0
  %308 = vmatpush1.msra.mxu0 0.0
  %309 = vmatprep.subr.mxu0 0.0
  %310 = vmatpush1.msra.mxu0 0.0
  %311 = vmatprep.subr.mxu0 0.0
  %312 = vmatpush1.msra.mxu0 0.0
  %313 = vmatprep.subr.mxu0 0.0
  %314 = vmatpush1.msra.mxu0 0.0
  %315 = vmatprep.subr.mxu0 0.0
  %316 = vmatpush1.msra.mxu0 0.0
  %317 = vmatprep.subr.mxu0 0.0
  %318 = vmatpush1.msra.mxu0 0.0
  %319 = vmatprep.subr.mxu0 0.0
  %320 = vmatpush1.msra.mxu0 0.0
  %321 = vmatprep.subr.mxu0 0.0
  %322 = vmatpush1.msra.mxu0 0.0
  %323 = vmatprep.subr.mxu0 0.0
  %324 = vmatpush1.msra.mxu0 0.0
  %325 = vmatprep.subr.mxu0 0.0
  %326 = vmatpush1.msra.mxu0 0.0
  %327 = vmatprep.subr.mxu0 0.0
  %328 = vmatpush1.msra.mxu0 0.0
  %329 = vmatprep.mubr.f32.mxu0 0.0
  %330 = vmatmul.mubr.f32.gmra.mrb[0].mxu0 %v263
  %v331 = vpop.f32.mrb[0].mxu0
  %v332 = vadd.f32 0.0, %v331
  %v333 = vpop.f32.mrb[0].mxu0
  %334 = vdwg.mxu0
  %v335 = vadd.f32 %v179, %v332
  %v336 = vtanh.pop %v335
  %v337 = vmul.f32 %v336, 0.5
  %v338 = vadd.f32 %v337, 0.5
  %v339 = vmul.f32 %v338, 0.0
  %341 = vrot.lane.b32.xlu0 %v336, 32
  %v342 = vpop.permute.xlu0 %341
  %v344 = vmul.f32 %v338, %v342
  %346 = vrot.lane.b32.xlu0 %v344, 32
  %v347 = vpop.permute.xlu0 %346
  %v349 = vadd.f32 %v339, %v347
  %v350 = vtanh.pop %v349
  %352 = vrot.lane.b32.xlu0 %v350, 32
  %v353 = vpop.permute.xlu0 %352
  %v355 = vmul.f32 %v338, %v353
  %357 = vrot.lane.b32.xlu0 %v355, 64
  %v358 = vpop.permute.xlu0 %357
  %v359 = vsel %vm261, %v358, 0
  %361 = vmatprep.subr.mxu0 0.0
  %362 = vmatpush1.msra.mxu0 %v257
  %363 = vmatprep.subr.mxu0 0.0
  %364 = vmatpush1.msra.mxu0 %v258
  %365 = vmatprep.subr.mxu0 0.0
  %366 = vmatpush1.msra.mxu0 %v259
  %367 = vmatprep.subr.mxu0 0.0
  %368 = vmatpush1.msra.mxu0 %v260
  %369 = vmatprep.subr.mxu0 0.0
  %370 = vmatpush1.msra.mxu0 0.0
  %371 = vmatprep.subr.mxu0 0.0
  %372 = vmatpush1.msra.mxu0 0.0
  %373 = vmatprep.subr.mxu0 0.0
  %374 = vmatpush1.msra.mxu0 0.0
  %375 = vmatprep.subr.mxu0 0.0
  %376 = vmatpush1.msra.mxu0 0.0
  %377 = vmatprep.subr.mxu0 0.0
  %378 = vmatpush1.msra.mxu0 0.0
  %379 = vmatprep.subr.mxu0 0.0
  %380 = vmatpush1.msra.mxu0 0.0
  %381 = vmatprep.subr.mxu0 0.0
  %382 = vmatpush1.msra.mxu0 0.0
  %383 = vmatprep.subr.mxu0 0.0
  %384 = vmatpush1.msra.mxu0 0.0
  %385 = vmatprep.subr.mxu0 0.0
  %386 = vmatpush1.msra.mxu0 0.0
  %387 = vmatprep.subr.mxu0 0.0
  %388 = vmatpush1.msra.mxu0 0.0
  %389 = vmatprep.subr.mxu0 0.0
  %390 = vmatpush1.msra.mxu0 0.0
  %391 = vmatprep.subr.mxu0 0.0
  %392 = vmatpush1.msra.mxu0 0.0
  %393 = vmatprep.subr.mxu0 0.0
  %394 = vmatpush1.msra.mxu0 0.0
  %395 = vmatprep.subr.mxu0 0.0
  %396 = vmatpush1.msra.mxu0 0.0
  %397 = vmatprep.subr.mxu0 0.0
  %398 = vmatpush1.msra.mxu0 0.0
  %399 = vmatprep.subr.mxu0 0.0
  %400 = vmatpush1.msra.mxu0 0.0
  %401 = vmatprep.subr.mxu0 0.0
  %402 = vmatpush1.msra.mxu0 0.0
  %403 = vmatprep.subr.mxu0 0.0
  %404 = vmatpush1.msra.mxu0 0.0
  %405 = vmatprep.subr.mxu0 0.0
  %406 = vmatpush1.msra.mxu0 0.0
  %407 = vmatprep.subr.mxu0 0.0
  %408 = vmatpush1.msra.mxu0 0.0
  %409 = vmatprep.subr.mxu0 0.0
  %410 = vmatpush1.msra.mxu0 0.0
  %411 = vmatprep.subr.mxu0 0.0
  %412 = vmatpush1.msra.mxu0 0.0
  %413 = vmatprep.subr.mxu0 0.0
  %414 = vmatpush1.msra.mxu0 0.0
  %415 = vmatprep.subr.mxu0 0.0
  %416 = vmatpush1.msra.mxu0 0.0
  %417 = vmatprep.subr.mxu0 0.0
  %418 = vmatpush1.msra.mxu0 0.0
  %419 = vmatprep.subr.mxu0 0.0
  %420 = vmatpush1.msra.mxu0 0.0
  %421 = vmatprep.subr.mxu0 0.0
  %422 = vmatpush1.msra.mxu0 0.0
  %423 = vmatprep.subr.mxu0 0.0
  %424 = vmatpush1.msra.mxu0 0.0
  %425 = vmatprep.mubr.f32.mxu0 0.0
  %426 = vmatmul.mubr.f32.gmra.mrb[0].mxu0 %v359
  %v427 = vpop.f32.mrb[0].mxu0
  %v428 = vadd.f32 0.0, %v427
  %v429 = vpop.f32.mrb[0].mxu0
  %430 = vdwg.mxu0
  %v431 = vadd.f32 %v184, %v428
  %v432 = vtanh.pop %v431
  %v433 = vmul.f32 %v432, 0.5
  %v434 = vadd.f32 %v433, 0.5
  %v435 = vmul.f32 %v434, %v349
  %437 = vrot.lane.b32.xlu0 %v432, 32
  %v438 = vpop.permute.xlu0 %437
  %v440 = vmul.f32 %v434, %v438
  %442 = vrot.lane.b32.xlu0 %v440, 32
  %v443 = vpop.permute.xlu0 %442
  %v445 = vadd.f32 %v435, %v443
  %v446 = vtanh.pop %v445
  %448 = vrot.lane.b32.xlu0 %v446, 32
  %v449 = vpop.permute.xlu0 %448
  %v451 = vmul.f32 %v434, %v449
  %453 = vrot.lane.b32.xlu0 %v451, 64
  %v454 = vpop.permute.xlu0 %453
  %v455 = vsel %vm261, %v454, 0
  %457 = vmatprep.subr.mxu0 0.0
  %458 = vmatpush1.msra.mxu0 %v257
  %459 = vmatprep.subr.mxu0 0.0
  %460 = vmatpush1.msra.mxu0 %v258
  %461 = vmatprep.subr.mxu0 0.0
  %462 = vmatpush1.msra.mxu0 %v259
  %463 = vmatprep.subr.mxu0 0.0
  %464 = vmatpush1.msra.mxu0 %v260
  %465 = vmatprep.subr.mxu0 0.0
  %466 = vmatpush1.msra.mxu0 0.0
  %467 = vmatprep.subr.mxu0 0.0
  %468 = vmatpush1.msra.mxu0 0.0
  %469 = vmatprep.subr.mxu0 0.0
  %470 = vmatpush1.msra.mxu0 0.0
  %471 = vmatprep.subr.mxu0 0.0
  %472 = vmatpush1.msra.mxu0 0.0
  %473 = vmatprep.subr.mxu0 0.0
  %474 = vmatpush1.msra.mxu0 0.0
  %475 = vmatprep.subr.mxu0 0.0
  %476 = vmatpush1.msra.mxu0 0.0
  %477 = vmatprep.subr.mxu0 0.0
  %478 = vmatpush1.msra.mxu0 0.0
  %479 = vmatprep.subr.mxu0 0.0
  %480 = vmatpush1.msra.mxu0 0.0
  %481 = vmatprep.subr.mxu0 0.0
  %482 = vmatpush1.msra.mxu0 0.0
  %483 = vmatprep.subr.mxu0 0.0
  %484 = vmatpush1.msra.mxu0 0.0
  %485 = vmatprep.subr.mxu0 0.0
  %486 = vmatpush1.msra.mxu0 0.0
  %487 = vmatprep.subr.mxu0 0.0
  %488 = vmatpush1.msra.mxu0 0.0
  %489 = vmatprep.subr.mxu0 0.0
  %490 = vmatpush1.msra.mxu0 0.0
  %491 = vmatprep.subr.mxu0 0.0
  %492 = vmatpush1.msra.mxu0 0.0
  %493 = vmatprep.subr.mxu0 0.0
  %494 = vmatpush1.msra.mxu0 0.0
  %495 = vmatprep.subr.mxu0 0.0
  %496 = vmatpush1.msra.mxu0 0.0
  %497 = vmatprep.subr.mxu0 0.0
  %498 = vmatpush1.msra.mxu0 0.0
  %499 = vmatprep.subr.mxu0 0.0
  %500 = vmatpush1.msra.mxu0 0.0
  %501 = vmatprep.subr.mxu0 0.0
  %502 = vmatpush1.msra.mxu0 0.0
  %503 = vmatprep.subr.mxu0 0.0
  %504 = vmatpush1.msra.mxu0 0.0
  %505 = vmatprep.subr.mxu0 0.0
  %506 = vmatpush1.msra.mxu0 0.0
  %507 = vmatprep.subr.mxu0 0.0
  %508 = vmatpush1.msra.mxu0 0.0
  %509 = vmatprep.subr.mxu0 0.0
  %510 = vmatpush1.msra.mxu0 0.0
  %511 = vmatprep.subr.mxu0 0.0
  %512 = vmatpush1.msra.mxu0 0.0
  %513 = vmatprep.subr.mxu0 0.0
  %514 = vmatpush1.msra.mxu0 0.0
  %515 = vmatprep.subr.mxu0 0.0
  %516 = vmatpush1.msra.mxu0 0.0
  %517 = vmatprep.subr.mxu0 0.0
  %518 = vmatpush1.msra.mxu0 0.0
  %519 = vmatprep.subr.mxu0 0.0
  %520 = vmatpush1.msra.mxu0 0.0
  %521 = vmatprep.mubr.f32.mxu0 0.0
  %522 = vmatmul.mubr.f32.gmra.mrb[0].mxu0 %v455
  %v523 = vpop.f32.mrb[0].mxu0
  %v524 = vadd.f32 0.0, %v523
  %v525 = vpop.f32.mrb[0].mxu0
  %526 = vdwg.mxu0
  %v527 = vadd.f32 %v189, %v524
  %v528 = vtanh.pop %v527
  %v529 = vmul.f32 %v528, 0.5
  %v530 = vadd.f32 %v529, 0.5
  %v531 = vmul.f32 %v530, %v445
  %533 = vrot.lane.b32.xlu0 %v528, 32
  %v534 = vpop.permute.xlu0 %533
  %v536 = vmul.f32 %v530, %v534
  %538 = vrot.lane.b32.xlu0 %v536, 32
  %v539 = vpop.permute.xlu0 %538
  %v541 = vadd.f32 %v531, %v539
  %v542 = vtanh.pop %v541
  %544 = vrot.lane.b32.xlu0 %v542, 32
  %v545 = vpop.permute.xlu0 %544
  %v547 = vmul.f32 %v530, %v545
  %549 = vrot.lane.b32.xlu0 %v547, 64
  %v550 = vpop.permute.xlu0 %549
  %v551 = vsel %vm261, %v550, 0
  %553 = vmatprep.subr.mxu0 0.0
  %554 = vmatpush1.msra.mxu0 %v257
  %555 = vmatprep.subr.mxu0 0.0
  %556 = vmatpush1.msra.mxu0 %v258
  %557 = vmatprep.subr.mxu0 0.0
  %558 = vmatpush1.msra.mxu0 %v259
  %559 = vmatprep.subr.mxu0 0.0
  %560 = vmatpush1.msra.mxu0 %v260
  %561 = vmatprep.subr.mxu0 0.0
  %562 = vmatpush1.msra.mxu0 0.0
  %563 = vmatprep.subr.mxu0 0.0
  %564 = vmatpush1.msra.mxu0 0.0
  %565 = vmatprep.subr.mxu0 0.0
  %566 = vmatpush1.msra.mxu0 0.0
  %567 = vmatprep.subr.mxu0 0.0
  %568 = vmatpush1.msra.mxu0 0.0
  %569 = vmatprep.subr.mxu0 0.0
  %570 = vmatpush1.msra.mxu0 0.0
  %571 = vmatprep.subr.mxu0 0.0
  %572 = vmatpush1.msra.mxu0 0.0
  %573 = vmatprep.subr.mxu0 0.0
  %574 = vmatpush1.msra.mxu0 0.0
  %575 = vmatprep.subr.mxu0 0.0
  %576 = vmatpush1.msra.mxu0 0.0
  %577 = vmatprep.subr.mxu0 0.0
  %578 = vmatpush1.msra.mxu0 0.0
  %579 = vmatprep.subr.mxu0 0.0
  %580 = vmatpush1.msra.mxu0 0.0
  %581 = vmatprep.subr.mxu0 0.0
  %582 = vmatpush1.msra.mxu0 0.0
  %583 = vmatprep.subr.mxu0 0.0
  %584 = vmatpush1.msra.mxu0 0.0
  %585 = vmatprep.subr.mxu0 0.0
  %586 = vmatpush1.msra.mxu0 0.0
  %587 = vmatprep.subr.mxu0 0.0
  %588 = vmatpush1.msra.mxu0 0.0
  %589 = vmatprep.subr.mxu0 0.0
  %590 = vmatpush1.msra.mxu0 0.0
  %591 = vmatprep.subr.mxu0 0.0
  %592 = vmatpush1.msra.mxu0 0.0
  %593 = vmatprep.subr.mxu0 0.0
  %594 = vmatpush1.msra.mxu0 0.0
  %595 = vmatprep.subr.mxu0 0.0
  %596 = vmatpush1.msra.mxu0 0.0
  %597 = vmatprep.subr.mxu0 0.0
  %598 = vmatpush1.msra.mxu0 0.0
  %599 = vmatprep.subr.mxu0 0.0
  %600 = vmatpush1.msra.mxu0 0.0
  %601 = vmatprep.subr.mxu0 0.0
  %602 = vmatpush1.msra.mxu0 0.0
  %603 = vmatprep.subr.mxu0 0.0
  %604 = vmatpush1.msra.mxu0 0.0
  %605 = vmatprep.subr.mxu0 0.0
  %606 = vmatpush1.msra.mxu0 0.0
  %607 = vmatprep.subr.mxu0 0.0
  %608 = vmatpush1.msra.mxu0 0.0
  %609 = vmatprep.subr.mxu0 0.0
  %610 = vmatpush1.msra.mxu0 0.0
  %611 = vmatprep.subr.mxu0 0.0
  %612 = vmatpush1.msra.mxu0 0.0
  %613 = vmatprep.subr.mxu0 0.0
  %614 = vmatpush1.msra.mxu0 0.0
  %615 = vmatprep.subr.mxu0 0.0
  %616 = vmatpush1.msra.mxu0 0.0
  %617 = vmatprep.mubr.f32.mxu0 0.0
  %618 = vmatmul.mubr.f32.gmra.mrb[0].mxu0 %v551
  %v619 = vpop.f32.mrb[0].mxu0
  %v620 = vadd.f32 0.0, %v619
  %v621 = vpop.f32.mrb[0].mxu0
  %622 = vdwg.mxu0
  %v623 = vadd.f32 %v194, %v620
  %v624 = vtanh.pop %v623
  %v625 = vmul.f32 %v624, 0.5
  %v626 = vadd.f32 %v625, 0.5
  %v627 = vmul.f32 %v626, %v541
  %629 = vrot.lane.b32.xlu0 %v624, 32
  %v630 = vpop.permute.xlu0 %629
  %v632 = vmul.f32 %v626, %v630
  %634 = vrot.lane.b32.xlu0 %v632, 32
  %v635 = vpop.permute.xlu0 %634
  %v637 = vadd.f32 %v627, %v635
  %v638 = vtanh.pop %v637
  %640 = vrot.lane.b32.xlu0 %v638, 32
  %v641 = vpop.permute.xlu0 %640
  %v643 = vmul.f32 %v626, %v641
  %645 = vrot.lane.b32.xlu0 %v643, 64
  %v646 = vpop.permute.xlu0 %645
  %v647 = vsel %vm261, %v646, 0
  %649 = vmatprep.subr.mxu0 0.0
  %650 = vmatpush1.msra.mxu0 %v257
  %651 = vmatprep.subr.mxu0 0.0
  %652 = vmatpush1.msra.mxu0 %v258
  %653 = vmatprep.subr.mxu0 0.0
  %654 = vmatpush1.msra.mxu0 %v259
  %655 = vmatprep.subr.mxu0 0.0
  %656 = vmatpush1.msra.mxu0 %v260
  %657 = vmatprep.subr.mxu0 0.0
  %658 = vmatpush1.msra.mxu0 0.0
  %659 = vmatprep.subr.mxu0 0.0
  %660 = vmatpush1.msra.mxu0 0.0
  %661 = vmatprep.subr.mxu0 0.0
  %662 = vmatpush1.msra.mxu0 0.0
  %663 = vmatprep.subr.mxu0 0.0
  %664 = vmatpush1.msra.mxu0 0.0
  %665 = vmatprep.subr.mxu0 0.0
  %666 = vmatpush1.msra.mxu0 0.0
  %667 = vmatprep.subr.mxu0 0.0
  %668 = vmatpush1.msra.mxu0 0.0
  %669 = vmatprep.subr.mxu0 0.0
  %670 = vmatpush1.msra.mxu0 0.0
  %671 = vmatprep.subr.mxu0 0.0
  %672 = vmatpush1.msra.mxu0 0.0
  %673 = vmatprep.subr.mxu0 0.0
  %674 = vmatpush1.msra.mxu0 0.0
  %675 = vmatprep.subr.mxu0 0.0
  %676 = vmatpush1.msra.mxu0 0.0
  %677 = vmatprep.subr.mxu0 0.0
  %678 = vmatpush1.msra.mxu0 0.0
  %679 = vmatprep.subr.mxu0 0.0
  %680 = vmatpush1.msra.mxu0 0.0
  %681 = vmatprep.subr.mxu0 0.0
  %682 = vmatpush1.msra.mxu0 0.0
  %683 = vmatprep.subr.mxu0 0.0
  %684 = vmatpush1.msra.mxu0 0.0
  %685 = vmatprep.subr.mxu0 0.0
  %686 = vmatpush1.msra.mxu0 0.0
  %687 = vmatprep.subr.mxu0 0.0
  %688 = vmatpush1.msra.mxu0 0.0
  %689 = vmatprep.subr.mxu0 0.0
  %690 = vmatpush1.msra.mxu0 0.0
  %691 = vmatprep.subr.mxu0 0.0
  %692 = vmatpush1.msra.mxu0 0.0
  %693 = vmatprep.subr.mxu0 0.0
  %694 = vmatpush1.msra.mxu0 0.0
  %695 = vmatprep.subr.mxu0 0.0
  %696 = vmatpush1.msra.mxu0 0.0
  %697 = vmatprep.subr.mxu0 0.0
  %698 = vmatpush1.msra.mxu0 0.0
  %699 = vmatprep.subr.mxu0 0.0
  %700 = vmatpush1.msra.mxu0 0.0
  %701 = vmatprep.subr.mxu0 0.0
  %702 = vmatpush1.msra.mxu0 0.0
  %703 = vmatprep.subr.mxu0 0.0
  %704 = vmatpush1.msra.mxu0 0.0
  %705 = vmatprep.subr.mxu0 0.0
  %706 = vmatpush1.msra.mxu0 0.0
  %707 = vmatprep.subr.mxu0 0.0
  %708 = vmatpush1.msra.mxu0 0.0
  %709 = vmatprep.subr.mxu0 0.0
  %710 = vmatpush1.msra.mxu0 0.0
  %711 = vmatprep.subr.mxu0 0.0
  %712 = vmatpush1.msra.mxu0 0.0
  %713 = vmatprep.mubr.f32.mxu0 0.0
  %714 = vmatmul.mubr.f32.gmra.mrb[0].mxu0 %v647
  %v715 = vpop.f32.mrb[0].mxu0
  %v716 = vadd.f32 0.0, %v715
  %v717 = vpop.f32.mrb[0].mxu0
  %718 = vdwg.mxu0
  %v719 = vadd.f32 %v199, %v716
  %v720 = vtanh.pop %v719
  %v721 = vmul.f32 %v720, 0.5
  %v722 = vadd.f32 %v721, 0.5
  %v723 = vmul.f32 %v722, %v637
  %725 = vrot.lane.b32.xlu0 %v720, 32
  %v726 = vpop.permute.xlu0 %725
  %v728 = vmul.f32 %v722, %v726
  %730 = vrot.lane.b32.xlu0 %v728, 32
  %v731 = vpop.permute.xlu0 %730
  %v733 = vadd.f32 %v723, %v731
  %v734 = vtanh.pop %v733
  %736 = vrot.lane.b32.xlu0 %v734, 32
  %v737 = vpop.permute.xlu0 %736
  %v739 = vmul.f32 %v722, %v737
  %741 = vrot.lane.b32.xlu0 %v739, 64
  %v742 = vpop.permute.xlu0 %741
  %v743 = vsel %vm261, %v742, 0
  %745 = vmatprep.subr.mxu0 0.0
  %746 = vmatpush1.msra.mxu0 %v257
  %747 = vmatprep.subr.mxu0 0.0
  %748 = vmatpush1.msra.mxu0 %v258
  %749 = vmatprep.subr.mxu0 0.0
  %750 = vmatpush1.msra.mxu0 %v259
  %751 = vmatprep.subr.mxu0 0.0
  %752 = vmatpush1.msra.mxu0 %v260
  %753 = vmatprep.subr.mxu0 0.0
  %754 = vmatpush1.msra.mxu0 0.0
  %755 = vmatprep.subr.mxu0 0.0
  %756 = vmatpush1.msra.mxu0 0.0
  %757 = vmatprep.subr.mxu0 0.0
  %758 = vmatpush1.msra.mxu0 0.0
  %759 = vmatprep.subr.mxu0 0.0
  %760 = vmatpush1.msra.mxu0 0.0
  %761 = vmatprep.subr.mxu0 0.0
  %762 = vmatpush1.msra.mxu0 0.0
  %763 = vmatprep.subr.mxu0 0.0
  %764 = vmatpush1.msra.mxu0 0.0
  %765 = vmatprep.subr.mxu0 0.0
  %766 = vmatpush1.msra.mxu0 0.0
  %767 = vmatprep.subr.mxu0 0.0
  %768 = vmatpush1.msra.mxu0 0.0
  %769 = vmatprep.subr.mxu0 0.0
  %770 = vmatpush1.msra.mxu0 0.0
  %771 = vmatprep.subr.mxu0 0.0
  %772 = vmatpush1.msra.mxu0 0.0
  %773 = vmatprep.subr.mxu0 0.0
  %774 = vmatpush1.msra.mxu0 0.0
  %775 = vmatprep.subr.mxu0 0.0
  %776 = vmatpush1.msra.mxu0 0.0
  %777 = vmatprep.subr.mxu0 0.0
  %778 = vmatpush1.msra.mxu0 0.0
  %779 = vmatprep.subr.mxu0 0.0
  %780 = vmatpush1.msra.mxu0 0.0
  %781 = vmatprep.subr.mxu0 0.0
  %782 = vmatpush1.msra.mxu0 0.0
  %783 = vmatprep.subr.mxu0 0.0
  %784 = vmatpush1.msra.mxu0 0.0
  %785 = vmatprep.subr.mxu0 0.0
  %786 = vmatpush1.msra.mxu0 0.0
  %787 = vmatprep.subr.mxu0 0.0
  %788 = vmatpush1.msra.mxu0 0.0
  %789 = vmatprep.subr.mxu0 0.0
  %790 = vmatpush1.msra.mxu0 0.0
  %791 = vmatprep.subr.mxu0 0.0
  %792 = vmatpush1.msra.mxu0 0.0
  %793 = vmatprep.subr.mxu0 0.0
  %794 = vmatpush1.msra.mxu0 0.0
  %795 = vmatprep.subr.mxu0 0.0
  %796 = vmatpush1.msra.mxu0 0.0
  %797 = vmatprep.subr.mxu0 0.0
  %798 = vmatpush1.msra.mxu0 0.0
  %799 = vmatprep.subr.mxu0 0.0
  %800 = vmatpush1.msra.mxu0 0.0
  %801 = vmatprep.subr.mxu0 0.0
  %802 = vmatpush1.msra.mxu0 0.0
  %803 = vmatprep.subr.mxu0 0.0
  %804 = vmatpush1.msra.mxu0 0.0
  %805 = vmatprep.subr.mxu0 0.0
  %806 = vmatpush1.msra.mxu0 0.0
  %807 = vmatprep.subr.mxu0 0.0
  %808 = vmatpush1.msra.mxu0 0.0
  %809 = vmatprep.mubr.f32.mxu0 0.0
  %810 = vmatmul.mubr.f32.gmra.mrb[0].mxu0 %v743
  %v811 = vpop.f32.mrb[0].mxu0
  %v812 = vadd.f32 0.0, %v811
  %v813 = vpop.f32.mrb[0].mxu0
  %814 = vdwg.mxu0
  %v815 = vadd.f32 %v204, %v812
  %v816 = vtanh.pop %v815
  %v817 = vmul.f32 %v816, 0.5
  %v818 = vadd.f32 %v817, 0.5
  %v819 = vmul.f32 %v818, %v733
  %821 = vrot.lane.b32.xlu0 %v816, 32
  %v822 = vpop.permute.xlu0 %821
  %v824 = vmul.f32 %v818, %v822
  %826 = vrot.lane.b32.xlu0 %v824, 32
  %v827 = vpop.permute.xlu0 %826
  %v829 = vadd.f32 %v819, %v827
  %v830 = vtanh.pop %v829
  %832 = vrot.lane.b32.xlu0 %v830, 32
  %v833 = vpop.permute.xlu0 %832
  %v835 = vmul.f32 %v818, %v833
  %837 = vrot.lane.b32.xlu0 %v835, 64
  %v838 = vpop.permute.xlu0 %837
  %v839 = vsel %vm261, %v838, 0
  %841 = vmatprep.subr.mxu0 0.0
  %842 = vmatpush1.msra.mxu0 %v257
  %843 = vmatprep.subr.mxu0 0.0
  %844 = vmatpush1.msra.mxu0 %v258
  %845 = vmatprep.subr.mxu0 0.0
  %846 = vmatpush1.msra.mxu0 %v259
  %847 = vmatprep.subr.mxu0 0.0
  %848 = vmatpush1.msra.mxu0 %v260
  %849 = vmatprep.subr.mxu0 0.0
  %850 = vmatpush1.msra.mxu0 0.0
  %851 = vmatprep.subr.mxu0 0.0
  %852 = vmatpush1.msra.mxu0 0.0
  %853 = vmatprep.subr.mxu0 0.0
  %854 = vmatpush1.msra.mxu0 0.0
  %855 = vmatprep.subr.mxu0 0.0
  %856 = vmatpush1.msra.mxu0 0.0
  %857 = vmatprep.subr.mxu0 0.0
  %858 = vmatpush1.msra.mxu0 0.0
  %859 = vmatprep.subr.mxu0 0.0
  %860 = vmatpush1.msra.mxu0 0.0
  %861 = vmatprep.subr.mxu0 0.0
  %862 = vmatpush1.msra.mxu0 0.0
  %863 = vmatprep.subr.mxu0 0.0
  %864 = vmatpush1.msra.mxu0 0.0
  %865 = vmatprep.subr.mxu0 0.0
  %866 = vmatpush1.msra.mxu0 0.0
  %867 = vmatprep.subr.mxu0 0.0
  %868 = vmatpush1.msra.mxu0 0.0
  %869 = vmatprep.subr.mxu0 0.0
  %870 = vmatpush1.msra.mxu0 0.0
  %871 = vmatprep.subr.mxu0 0.0
  %872 = vmatpush1.msra.mxu0 0.0
  %873 = vmatprep.subr.mxu0 0.0
  %874 = vmatpush1.msra.mxu0 0.0
  %875 = vmatprep.subr.mxu0 0.0
  %876 = vmatpush1.msra.mxu0 0.0
  %877 = vmatprep.subr.mxu0 0.0
  %878 = vmatpush1.msra.mxu0 0.0
  %879 = vmatprep.subr.mxu0 0.0
  %880 = vmatpush1.msra.mxu0 0.0
  %881 = vmatprep.subr.mxu0 0.0
  %882 = vmatpush1.msra.mxu0 0.0
  %883 = vmatprep.subr.mxu0 0.0
  %884 = vmatpush1.msra.mxu0 0.0
  %885 = vmatprep.subr.mxu0 0.0
  %886 = vmatpush1.msra.mxu0 0.0
  %887 = vmatprep.subr.mxu0 0.0
  %888 = vmatpush1.msra.mxu0 0.0
  %889 = vmatprep.subr.mxu0 0.0
  %890 = vmatpush1.msra.mxu0 0.0
  %891 = vmatprep.subr.mxu0 0.0
  %892 = vmatpush1.msra.mxu0 0.0
  %893 = vmatprep.subr.mxu0 0.0
  %894 = vmatpush1.msra.mxu0 0.0
  %895 = vmatprep.subr.mxu0 0.0
  %896 = vmatpush1.msra.mxu0 0.0
  %897 = vmatprep.subr.mxu0 0.0
  %898 = vmatpush1.msra.mxu0 0.0
  %899 = vmatprep.subr.mxu0 0.0
  %900 = vmatpush1.msra.mxu0 0.0
  %901 = vmatprep.subr.mxu0 0.0
  %902 = vmatpush1.msra.mxu0 0.0
  %903 = vmatprep.subr.mxu0 0.0
  %904 = vmatpush1.msra.mxu0 0.0
  %905 = vmatprep.mubr.f32.mxu0 0.0
  %906 = vmatmul.mubr.f32.gmra.mrb[0].mxu0 %v839
  %v907 = vpop.f32.mrb[0].mxu0
  %v908 = vadd.f32 0.0, %v907
  %v909 = vpop.f32.mrb[0].mxu0
  %910 = vdwg.mxu0
  %v911 = vadd.f32 %v209, %v908
  %v912 = vtanh.pop %v911
  %v913 = vmul.f32 %v912, 0.5
  %v914 = vadd.f32 %v913, 0.5
  %v915 = vmul.f32 %v914, %v829
  %917 = vrot.lane.b32.xlu0 %v912, 32
  %v918 = vpop.permute.xlu0 %917
  %v920 = vmul.f32 %v914, %v918
  %922 = vrot.lane.b32.xlu0 %v920, 32
  %v923 = vpop.permute.xlu0 %922
  %v925 = vadd.f32 %v915, %v923
  %v926 = vtanh.pop %v925
  %928 = vrot.lane.b32.xlu0 %v926, 32
  %v929 = vpop.permute.xlu0 %928
  %v931 = vmul.f32 %v914, %v929
  %933 = vrot.lane.b32.xlu0 %v931, 64
  %v934 = vpop.permute.xlu0 %933
  %v935 = vsel %vm261, %v934, 0
  %937 = vmatprep.subr.mxu0 0.0
  %938 = vmatpush1.msra.mxu0 %v257
  %939 = vmatprep.subr.mxu0 0.0
  %940 = vmatpush1.msra.mxu0 %v258
  %941 = vmatprep.subr.mxu0 0.0
  %942 = vmatpush1.msra.mxu0 %v259
  %943 = vmatprep.subr.mxu0 0.0
  %944 = vmatpush1.msra.mxu0 %v260
  %945 = vmatprep.subr.mxu0 0.0
  %946 = vmatpush1.msra.mxu0 0.0
  %947 = vmatprep.subr.mxu0 0.0
  %948 = vmatpush1.msra.mxu0 0.0
  %949 = vmatprep.subr.mxu0 0.0
  %950 = vmatpush1.msra.mxu0 0.0
  %951 = vmatprep.subr.mxu0 0.0
  %952 = vmatpush1.msra.mxu0 0.0
  %953 = vmatprep.subr.mxu0 0.0
  %954 = vmatpush1.msra.mxu0 0.0
  %955 = vmatprep.subr.mxu0 0.0
  %956 = vmatpush1.msra.mxu0 0.0
  %957 = vmatprep.subr.mxu0 0.0
  %958 = vmatpush1.msra.mxu0 0.0
  %959 = vmatprep.subr.mxu0 0.0
  %960 = vmatpush1.msra.mxu0 0.0
  %961 = vmatprep.subr.mxu0 0.0
  %962 = vmatpush1.msra.mxu0 0.0
  %963 = vmatprep.subr.mxu0 0.0
  %964 = vmatpush1.msra.mxu0 0.0
  %965 = vmatprep.subr.mxu0 0.0
  %966 = vmatpush1.msra.mxu0 0.0
  %967 = vmatprep.subr.mxu0 0.0
  %968 = vmatpush1.msra.mxu0 0.0
  %969 = vmatprep.subr.mxu0 0.0
  %970 = vmatpush1.msra.mxu0 0.0
  %971 = vmatprep.subr.mxu0 0.0
  %972 = vmatpush1.msra.mxu0 0.0
  %973 = vmatprep.subr.mxu0 0.0
  %974 = vmatpush1.msra.mxu0 0.0
  %975 = vmatprep.subr.mxu0 0.0
  %976 = vmatpush1.msra.mxu0 0.0
  %977 = vmatprep.subr.mxu0 0.0
  %978 = vmatpush1.msra.mxu0 0.0
  %979 = vmatprep.subr.mxu0 0.0
  %980 = vmatpush1.msra.mxu0 0.0
  %981 = vmatprep.subr.mxu0 0.0
  %982 = vmatpush1.msra.mxu0 0.0
  %983 = vmatprep.subr.mxu0 0.0
  %984 = vmatpush1.msra.mxu0 0.0
  %985 = vmatprep.subr.mxu0 0.0
  %986 = vmatpush1.msra.mxu0 0.0
  %987 = vmatprep.subr.mxu0 0.0
  %988 = vmatpush1.msra.mxu0 0.0
  %989 = vmatprep.subr.mxu0 0.0
  %990 = vmatpush1.msra.mxu0 0.0
  %991 = vmatprep.subr.mxu0 0.0
  %992 = vmatpush1.msra.mxu0 0.0
  %993 = vmatprep.subr.mxu0 0.0
  %994 = vmatpush1.msra.mxu0 0.0
  %995 = vmatprep.subr.mxu0 0.0
  %996 = vmatpush1.msra.mxu0 0.0
  %997 = vmatprep.subr.mxu0 0.0
  %998 = vmatpush1.msra.mxu0 0.0
  %999 = vmatprep.subr.mxu0 0.0
  %1000 = vmatpush1.msra.mxu0 0.0
  %1001 = vmatprep.mubr.f32.mxu0 0.0
  %1002 = vmatmul.mubr.f32.gmra.mrb[0].mxu0 %v935
  %v1003 = vpop.f32.mrb[0].mxu0
  %v1004 = vadd.f32 0.0, %v1003
  %v1005 = vpop.f32.mrb[0].mxu0
  %1006 = vdwg.mxu0
  %v1007 = vadd.f32 %v214, %v1004
  %v1008 = vtanh.pop %v1007
  %v1009 = vmul.f32 %v1008, 0.5
  %v1010 = vadd.f32 %v1009, 0.5
  %v1011 = vmul.f32 %v1010, %v925
  %1013 = vrot.lane.b32.xlu0 %v1008, 32
  %v1014 = vpop.permute.xlu0 %1013
  %v1016 = vmul.f32 %v1010, %v1014
  %1018 = vrot.lane.b32.xlu0 %v1016, 32
  %v1019 = vpop.permute.xlu0 %1018
  %v1021 = vadd.f32 %v1011, %v1019
  %v1022 = vtanh.pop %v1021
  %1024 = vrot.lane.b32.xlu0 %v1022, 32
  %v1025 = vpop.permute.xlu0 %1024
  %v1027 = vmul.f32 %v1010, %v1025
  %1029 = vrot.lane.b32.xlu0 %v1027, 64
  %v1030 = vpop.permute.xlu0 %1029
  %v1031 = vsel %vm261, %v1030, 0
  %1033 = vmatprep.subr.mxu0 0.0
  %1034 = vmatpush1.msra.mxu0 %v257
  %1035 = vmatprep.subr.mxu0 0.0
  %1036 = vmatpush1.msra.mxu0 %v258
  %1037 = vmatprep.subr.mxu0 0.0
  %1038 = vmatpush1.msra.mxu0 %v259
  %1039 = vmatprep.subr.mxu0 0.0
  %1040 = vmatpush1.msra.mxu0 %v260
  %1041 = vmatprep.subr.mxu0 0.0
  %1042 = vmatpush1.msra.mxu0 0.0
  %1043 = vmatprep.subr.mxu0 0.0
  %1044 = vmatpush1.msra.mxu0 0.0
  %1045 = vmatprep.subr.mxu0 0.0
  %1046 = vmatpush1.msra.mxu0 0.0
  %1047 = vmatprep.subr.mxu0 0.0
  %1048 = vmatpush1.msra.mxu0 0.0
  %1049 = vmatprep.subr.mxu0 0.0
  %1050 = vmatpush1.msra.mxu0 0.0
  %1051 = vmatprep.subr.mxu0 0.0
  %1052 = vmatpush1.msra.mxu0 0.0
  %1053 = vmatprep.subr.mxu0 0.0
  %1054 = vmatpush1.msra.mxu0 0.0
  %1055 = vmatprep.subr.mxu0 0.0
  %1056 = vmatpush1.msra.mxu0 0.0
  %1057 = vmatprep.subr.mxu0 0.0
  %1058 = vmatpush1.msra.mxu0 0.0
  %1059 = vmatprep.subr.mxu0 0.0
  %1060 = vmatpush1.msra.mxu0 0.0
  %1061 = vmatprep.subr.mxu0 0.0
  %1062 = vmatpush1.msra.mxu0 0.0
  %1063 = vmatprep.subr.mxu0 0.0
  %1064 = vmatpush1.msra.mxu0 0.0
  %1065 = vmatprep.subr.mxu0 0.0
  %1066 = vmatpush1.msra.mxu0 0.0
  %1067 = vmatprep.subr.mxu0 0.0
  %1068 = vmatpush1.msra.mxu0 0.0
  %1069 = vmatprep.subr.mxu0 0.0
  %1070 = vmatpush1.msra.mxu0 0.0
  %1071 = vmatprep.subr.mxu0 0.0
  %1072 = vmatpush1.msra.mxu0 0.0
  %1073 = vmatprep.subr.mxu0 0.0
  %1074 = vmatpush1.msra.mxu0 0.0
  %1075 = vmatprep.subr.mxu0 0.0
  %1076 = vmatpush1.msra.mxu0 0.0
  %1077 = vmatprep.subr.mxu0 0.0
  %1078 = vmatpush1.msra.mxu0 0.0
  %1079 = vmatprep.subr.mxu0 0.0
  %1080 = vmatpush1.msra.mxu0 0.0
  %1081 = vmatprep.subr.mxu0 0.0
  %1082 = vmatpush1.msra.mxu0 0.0
  %1083 = vmatprep.subr.mxu0 0.0
  %1084 = vmatpush1.msra.mxu0 0.0
  %1085 = vmatprep.subr.mxu0 0.0
  %1086 = vmatpush1.msra.mxu0 0.0
  %1087 = vmatprep.subr.mxu0 0.0
  %1088 = vmatpush1.msra.mxu0 0.0
  %1089 = vmatprep.subr.mxu0 0.0
  %1090 = vmatpush1.msra.mxu0 0.0
  %1091 = vmatprep.subr.mxu0 0.0
  %1092 = vmatpush1.msra.mxu0 0.0
  %1093 = vmatprep.subr.mxu0 0.0
  %1094 = vmatpush1.msra.mxu0 0.0
  %1095 = vmatprep.subr.mxu0 0.0
  %1096 = vmatpush1.msra.mxu0 0.0
  %1097 = vmatprep.mubr.f32.mxu0 0.0
  %1098 = vmatmul.mubr.f32.gmra.mrb[0].mxu0 %v1031
  %v1099 = vpop.f32.mrb[0].mxu0
  %v1100 = vadd.f32 0.0, %v1099
  %v1101 = vpop.f32.mrb[0].mxu0
  %1102 = vdwg.mxu0
  %v1103 = vadd.f32 %v219, %v1100
  %v1104 = vtanh.pop %v1103
  %v1105 = vmul.f32 %v1104, 0.5
  %v1106 = vadd.f32 %v1105, 0.5
  %v1107 = vmul.f32 %v1106, %v1021
  %1109 = vrot.lane.b32.xlu0 %v1104, 32
  %v1110 = vpop.permute.xlu0 %1109
  %v1112 = vmul.f32 %v1106, %v1110
  %1114 = vrot.lane.b32.xlu0 %v1112, 32
  %v1115 = vpop.permute.xlu0 %1114
  %v1117 = vadd.f32 %v1107, %v1115
  %v1118 = vtanh.pop %v1117
  %1120 = vrot.lane.b32.xlu0 %v1118, 32
  %v1121 = vpop.permute.xlu0 %1120
  %v1123 = vmul.f32 %v1106, %v1121
  %1125 = vrot.lane.b32.xlu0 %v1123, 64
  %v1126 = vpop.permute.xlu0 %1125
  %v1127 = vsel %vm261, %v1126, 0
  %1129 = vmatprep.subr.mxu0 0.0
  %1130 = vmatpush1.msra.mxu0 %v257
  %1131 = vmatprep.subr.mxu0 0.0
  %1132 = vmatpush1.msra.mxu0 %v258
  %1133 = vmatprep.subr.mxu0 0.0
  %1134 = vmatpush1.msra.mxu0 %v259
  %1135 = vmatprep.subr.mxu0 0.0
  %1136 = vmatpush1.msra.mxu0 %v260
  %1137 = vmatprep.subr.mxu0 0.0
  %1138 = vmatpush1.msra.mxu0 0.0
  %1139 = vmatprep.subr.mxu0 0.0
  %1140 = vmatpush1.msra.mxu0 0.0
  %1141 = vmatprep.subr.mxu0 0.0
  %1142 = vmatpush1.msra.mxu0 0.0
  %1143 = vmatprep.subr.mxu0 0.0
  %1144 = vmatpush1.msra.mxu0 0.0
  %1145 = vmatprep.subr.mxu0 0.0
  %1146 = vmatpush1.msra.mxu0 0.0
  %1147 = vmatprep.subr.mxu0 0.0
  %1148 = vmatpush1.msra.mxu0 0.0
  %1149 = vmatprep.subr.mxu0 0.0
  %1150 = vmatpush1.msra.mxu0 0.0
  %1151 = vmatprep.subr.mxu0 0.0
  %1152 = vmatpush1.msra.mxu0 0.0
  %1153 = vmatprep.subr.mxu0 0.0
  %1154 = vmatpush1.msra.mxu0 0.0
  %1155 = vmatprep.subr.mxu0 0.0
  %1156 = vmatpush1.msra.mxu0 0.0
  %1157 = vmatprep.subr.mxu0 0.0
  %1158 = vmatpush1.msra.mxu0 0.0
  %1159 = vmatprep.subr.mxu0 0.0
  %1160 = vmatpush1.msra.mxu0 0.0
  %1161 = vmatprep.subr.mxu0 0.0
  %1162 = vmatpush1.msra.mxu0 0.0
  %1163 = vmatprep.subr.mxu0 0.0
  %1164 = vmatpush1.msra.mxu0 0.0
  %1165 = vmatprep.subr.mxu0 0.0
  %1166 = vmatpush1.msra.mxu0 0.0
  %1167 = vmatprep.subr.mxu0 0.0
  %1168 = vmatpush1.msra.mxu0 0.0
  %1169 = vmatprep.subr.mxu0 0.0
  %1170 = vmatpush1.msra.mxu0 0.0
  %1171 = vmatprep.subr.mxu0 0.0
  %1172 = vmatpush1.msra.mxu0 0.0
  %1173 = vmatprep.subr.mxu0 0.0
  %1174 = vmatpush1.msra.mxu0 0.0
  %1175 = vmatprep.subr.mxu0 0.0
  %1176 = vmatpush1.msra.mxu0 0.0
  %1177 = vmatprep.subr.mxu0 0.0
  %1178 = vmatpush1.msra.mxu0 0.0
  %1179 = vmatprep.subr.mxu0 0.0
  %1180 = vmatpush1.msra.mxu0 0.0
  %1181 = vmatprep.subr.mxu0 0.0
  %1182 = vmatpush1.msra.mxu0 0.0
  %1183 = vmatprep.subr.mxu0 0.0
  %1184 = vmatpush1.msra.mxu0 0.0
  %1185 = vmatprep.subr.mxu0 0.0
  %1186 = vmatpush1.msra.mxu0 0.0
  %1187 = vmatprep.subr.mxu0 0.0
  %1188 = vmatpush1.msra.mxu0 0.0
  %1189 = vmatprep.subr.mxu0 0.0
  %1190 = vmatpush1.msra.mxu0 0.0
  %1191 = vmatprep.subr.mxu0 0.0
  %1192 = vmatpush1.msra.mxu0 0.0
  %1193 = vmatprep.mubr.f32.mxu0 0.0
  %1194 = vmatmul.mubr.f32.gmra.mrb[0].mxu0 %v1127
  %v1195 = vpop.f32.mrb[0].mxu0
  %v1196 = vadd.f32 0.0, %v1195
  %v1197 = vpop.f32.mrb[0].mxu0
  %1198 = vdwg.mxu0
  %v1199 = vadd.f32 %v224, %v1196
  %v1200 = vtanh.pop %v1199
  %v1201 = vmul.f32 %v1200, 0.5
  %v1202 = vadd.f32 %v1201, 0.5
  %v1203 = vmul.f32 %v1202, %v1117
  %1205 = vrot.lane.b32.xlu0 %v1200, 32
  %v1206 = vpop.permute.xlu0 %1205
  %v1208 = vmul.f32 %v1202, %v1206
  %1210 = vrot.lane.b32.xlu0 %v1208, 32
  %v1211 = vpop.permute.xlu0 %1210
  %v1213 = vadd.f32 %v1203, %v1211
  %v1214 = vtanh.pop %v1213
  %1216 = vrot.lane.b32.xlu0 %v1214, 32
  %v1217 = vpop.permute.xlu0 %1216
  %v1219 = vmul.f32 %v1202, %v1217
  %1221 = vrot.lane.b32.xlu0 %v1219, 64
  %v1222 = vpop.permute.xlu0 %1221
  %v1223 = vsel %vm261, %v1222, 0
  %1225 = vmatprep.subr.mxu0 0.0
  %1226 = vmatpush1.msra.mxu0 %v257
  %1227 = vmatprep.subr.mxu0 0.0
  %1228 = vmatpush1.msra.mxu0 %v258
  %1229 = vmatprep.subr.mxu0 0.0
  %1230 = vmatpush1.msra.mxu0 %v259
  %1231 = vmatprep.subr.mxu0 0.0
  %1232 = vmatpush1.msra.mxu0 %v260
  %1233 = vmatprep.subr.mxu0 0.0
  %1234 = vmatpush1.msra.mxu0 0.0
  %1235 = vmatprep.subr.mxu0 0.0
  %1236 = vmatpush1.msra.mxu0 0.0
  %1237 = vmatprep.subr.mxu0 0.0
  %1238 = vmatpush1.msra.mxu0 0.0
  %1239 = vmatprep.subr.mxu0 0.0
  %1240 = vmatpush1.msra.mxu0 0.0
  %1241 = vmatprep.subr.mxu0 0.0
  %1242 = vmatpush1.msra.mxu0 0.0
  %1243 = vmatprep.subr.mxu0 0.0
  %1244 = vmatpush1.msra.mxu0 0.0
  %1245 = vmatprep.subr.mxu0 0.0
  %1246 = vmatpush1.msra.mxu0 0.0
  %1247 = vmatprep.subr.mxu0 0.0
  %1248 = vmatpush1.msra.mxu0 0.0
  %1249 = vmatprep.subr.mxu0 0.0
  %1250 = vmatpush1.msra.mxu0 0.0
  %1251 = vmatprep.subr.mxu0 0.0
  %1252 = vmatpush1.msra.mxu0 0.0
  %1253 = vmatprep.subr.mxu0 0.0
  %1254 = vmatpush1.msra.mxu0 0.0
  %1255 = vmatprep.subr.mxu0 0.0
  %1256 = vmatpush1.msra.mxu0 0.0
  %1257 = vmatprep.subr.mxu0 0.0
  %1258 = vmatpush1.msra.mxu0 0.0
  %1259 = vmatprep.subr.mxu0 0.0
  %1260 = vmatpush1.msra.mxu0 0.0
  %1261 = vmatprep.subr.mxu0 0.0
  %1262 = vmatpush1.msra.mxu0 0.0
  %1263 = vmatprep.subr.mxu0 0.0
  %1264 = vmatpush1.msra.mxu0 0.0
  %1265 = vmatprep.subr.mxu0 0.0
  %1266 = vmatpush1.msra.mxu0 0.0
  %1267 = vmatprep.subr.mxu0 0.0
  %1268 = vmatpush1.msra.mxu0 0.0
  %1269 = vmatprep.subr.mxu0 0.0
  %1270 = vmatpush1.msra.mxu0 0.0
  %1271 = vmatprep.subr.mxu0 0.0
  %1272 = vmatpush1.msra.mxu0 0.0
  %1273 = vmatprep.subr.mxu0 0.0
  %1274 = vmatpush1.msra.mxu0 0.0
  %1275 = vmatprep.subr.mxu0 0.0
  %1276 = vmatpush1.msra.mxu0 0.0
  %1277 = vmatprep.subr.mxu0 0.0
  %1278 = vmatpush1.msra.mxu0 0.0
  %1279 = vmatprep.subr.mxu0 0.0
  %1280 = vmatpush1.msra.mxu0 0.0
  %1281 = vmatprep.subr.mxu0 0.0
  %1282 = vmatpush1.msra.mxu0 0.0
  %1283 = vmatprep.subr.mxu0 0.0
  %1284 = vmatpush1.msra.mxu0 0.0
  %1285 = vmatprep.subr.mxu0 0.0
  %1286 = vmatpush1.msra.mxu0 0.0
  %1287 = vmatprep.subr.mxu0 0.0
  %1288 = vmatpush1.msra.mxu0 0.0
  %1289 = vmatprep.mubr.f32.mxu0 0.0
  %1290 = vmatmul.mubr.f32.gmra.mrb[0].mxu0 %v1223
  %v1291 = vpop.f32.mrb[0].mxu0
  %v1292 = vadd.f32 0.0, %v1291
  %v1293 = vpop.f32.mrb[0].mxu0
  %1294 = vdwg.mxu0
  %v1295 = vadd.f32 %v229, %v1292
  %v1296 = vtanh.pop %v1295
  %v1297 = vmul.f32 %v1296, 0.5
  %v1298 = vadd.f32 %v1297, 0.5
  %v1299 = vmul.f32 %v1298, %v1213
  %1301 = vrot.lane.b32.xlu0 %v1296, 32
  %v1302 = vpop.permute.xlu0 %1301
  %v1304 = vmul.f32 %v1298, %v1302
  %1306 = vrot.lane.b32.xlu0 %v1304, 32
  %v1307 = vpop.permute.xlu0 %1306
  %v1309 = vadd.f32 %v1299, %v1307
  %v1310 = vtanh.pop %v1309
  %1312 = vrot.lane.b32.xlu0 %v1310, 32
  %v1313 = vpop.permute.xlu0 %1312
  %v1315 = vmul.f32 %v1298, %v1313
  %1317 = vrot.lane.b32.xlu0 %v1315, 64
  %v1318 = vpop.permute.xlu0 %1317
  %v1319 = vsel %vm261, %v1318, 0
  %1321 = vmatprep.subr.mxu0 0.0
  %1322 = vmatpush1.msra.mxu0 %v257
  %1323 = vmatprep.subr.mxu0 0.0
  %1324 = vmatpush1.msra.mxu0 %v258
  %1325 = vmatprep.subr.mxu0 0.0
  %1326 = vmatpush1.msra.mxu0 %v259
  %1327 = vmatprep.subr.mxu0 0.0
  %1328 = vmatpush1.msra.mxu0 %v260
  %1329 = vmatprep.subr.mxu0 0.0
  %1330 = vmatpush1.msra.mxu0 0.0
  %1331 = vmatprep.subr.mxu0 0.0
  %1332 = vmatpush1.msra.mxu0 0.0
  %1333 = vmatprep.subr.mxu0 0.0
  %1334 = vmatpush1.msra.mxu0 0.0
  %1335 = vmatprep.subr.mxu0 0.0
  %1336 = vmatpush1.msra.mxu0 0.0
  %1337 = vmatprep.subr.mxu0 0.0
  %1338 = vmatpush1.msra.mxu0 0.0
  %1339 = vmatprep.subr.mxu0 0.0
  %1340 = vmatpush1.msra.mxu0 0.0
  %1341 = vmatprep.subr.mxu0 0.0
  %1342 = vmatpush1.msra.mxu0 0.0
  %1343 = vmatprep.subr.mxu0 0.0
  %1344 = vmatpush1.msra.mxu0 0.0
  %1345 = vmatprep.subr.mxu0 0.0
  %1346 = vmatpush1.msra.mxu0 0.0
  %1347 = vmatprep.subr.mxu0 0.0
  %1348 = vmatpush1.msra.mxu0 0.0
  %1349 = vmatprep.subr.mxu0 0.0
  %1350 = vmatpush1.msra.mxu0 0.0
  %1351 = vmatprep.subr.mxu0 0.0
  %1352 = vmatpush1.msra.mxu0 0.0
  %1353 = vmatprep.subr.mxu0 0.0
  %1354 = vmatpush1.msra.mxu0 0.0
  %1355 = vmatprep.subr.mxu0 0.0
  %1356 = vmatpush1.msra.mxu0 0.0
  %1357 = vmatprep.subr.mxu0 0.0
  %1358 = vmatpush1.msra.mxu0 0.0
  %1359 = vmatprep.subr.mxu0 0.0
  %1360 = vmatpush1.msra.mxu0 0.0
  %1361 = vmatprep.subr.mxu0 0.0
  %1362 = vmatpush1.msra.mxu0 0.0
  %1363 = vmatprep.subr.mxu0 0.0
  %1364 = vmatpush1.msra.mxu0 0.0
  %1365 = vmatprep.subr.mxu0 0.0
  %1366 = vmatpush1.msra.mxu0 0.0
  %1367 = vmatprep.subr.mxu0 0.0
  %1368 = vmatpush1.msra.mxu0 0.0
  %1369 = vmatprep.subr.mxu0 0.0
  %1370 = vmatpush1.msra.mxu0 0.0
  %1371 = vmatprep.subr.mxu0 0.0
  %1372 = vmatpush1.msra.mxu0 0.0
  %1373 = vmatprep.subr.mxu0 0.0
  %1374 = vmatpush1.msra.mxu0 0.0
  %1375 = vmatprep.subr.mxu0 0.0
  %1376 = vmatpush1.msra.mxu0 0.0
  %1377 = vmatprep.subr.mxu0 0.0
  %1378 = vmatpush1.msra.mxu0 0.0
  %1379 = vmatprep.subr.mxu0 0.0
  %1380 = vmatpush1.msra.mxu0 0.0
  %1381 = vmatprep.subr.mxu0 0.0
  %1382 = vmatpush1.msra.mxu0 0.0
  %1383 = vmatprep.subr.mxu0 0.0
  %1384 = vmatpush1.msra.mxu0 0.0
  %1385 = vmatprep.mubr.f32.mxu0 0.0
  %1386 = vmatmul.mubr.f32.gmra.mrb[0].mxu0 %v1319
  %v1387 = vpop.f32.mrb[0].mxu0
  %v1388 = vadd.f32 0.0, %v1387
  %v1389 = vpop.f32.mrb[0].mxu0
  %1390 = vdwg.mxu0
  %v1391 = vadd.f32 %v234, %v1388
  %v1392 = vtanh.pop %v1391
  %v1393 = vmul.f32 %v1392, 0.5
  %v1394 = vadd.f32 %v1393, 0.5
  %v1395 = vmul.f32 %v1394, %v1309
  %1397 = vrot.lane.b32.xlu0 %v1392, 32
  %v1398 = vpop.permute.xlu0 %1397
  %v1400 = vmul.f32 %v1394, %v1398
  %1402 = vrot.lane.b32.xlu0 %v1400, 32
  %v1403 = vpop.permute.xlu0 %1402
  %v1405 = vadd.f32 %v1395, %v1403
  %v1406 = vtanh.pop %v1405
  %1408 = vrot.lane.b32.xlu0 %v1406, 32
  %v1409 = vpop.permute.xlu0 %1408
  %v1411 = vmul.f32 %v1394, %v1409
  %1413 = vrot.lane.b32.xlu0 %v1411, 64
  %v1414 = vpop.permute.xlu0 %1413
  %v1415 = vsel %vm261, %v1414, 0
  %1417 = vmatprep.subr.mxu0 0.0
  %1418 = vmatpush1.msra.mxu0 %v257
  %1419 = vmatprep.subr.mxu0 0.0
  %1420 = vmatpush1.msra.mxu0 %v258
  %1421 = vmatprep.subr.mxu0 0.0
  %1422 = vmatpush1.msra.mxu0 %v259
  %1423 = vmatprep.subr.mxu0 0.0
  %1424 = vmatpush1.msra.mxu0 %v260
  %1425 = vmatprep.subr.mxu0 0.0
  %1426 = vmatpush1.msra.mxu0 0.0
  %1427 = vmatprep.subr.mxu0 0.0
  %1428 = vmatpush1.msra.mxu0 0.0
  %1429 = vmatprep.subr.mxu0 0.0
  %1430 = vmatpush1.msra.mxu0 0.0
  %1431 = vmatprep.subr.mxu0 0.0
  %1432 = vmatpush1.msra.mxu0 0.0
  %1433 = vmatprep.subr.mxu0 0.0
  %1434 = vmatpush1.msra.mxu0 0.0
  %1435 = vmatprep.subr.mxu0 0.0
  %1436 = vmatpush1.msra.mxu0 0.0
  %1437 = vmatprep.subr.mxu0 0.0
  %1438 = vmatpush1.msra.mxu0 0.0
  %1439 = vmatprep.subr.mxu0 0.0
  %1440 = vmatpush1.msra.mxu0 0.0
  %1441 = vmatprep.subr.mxu0 0.0
  %1442 = vmatpush1.msra.mxu0 0.0
  %1443 = vmatprep.subr.mxu0 0.0
  %1444 = vmatpush1.msra.mxu0 0.0
  %1445 = vmatprep.subr.mxu0 0.0
  %1446 = vmatpush1.msra.mxu0 0.0
  %1447 = vmatprep.subr.mxu0 0.0
  %1448 = vmatpush1.msra.mxu0 0.0
  %1449 = vmatprep.subr.mxu0 0.0
  %1450 = vmatpush1.msra.mxu0 0.0
  %1451 = vmatprep.subr.mxu0 0.0
  %1452 = vmatpush1.msra.mxu0 0.0
  %1453 = vmatprep.subr.mxu0 0.0
  %1454 = vmatpush1.msra.mxu0 0.0
  %1455 = vmatprep.subr.mxu0 0.0
  %1456 = vmatpush1.msra.mxu0 0.0
  %1457 = vmatprep.subr.mxu0 0.0
  %1458 = vmatpush1.msra.mxu0 0.0
  %1459 = vmatprep.subr.mxu0 0.0
  %1460 = vmatpush1.msra.mxu0 0.0
  %1461 = vmatprep.subr.mxu0 0.0
  %1462 = vmatpush1.msra.mxu0 0.0
  %1463 = vmatprep.subr.mxu0 0.0
  %1464 = vmatpush1.msra.mxu0 0.0
  %1465 = vmatprep.subr.mxu0 0.0
  %1466 = vmatpush1.msra.mxu0 0.0
  %1467 = vmatprep.subr.mxu0 0.0
  %1468 = vmatpush1.msra.mxu0 0.0
  %1469 = vmatprep.subr.mxu0 0.0
  %1470 = vmatpush1.msra.mxu0 0.0
  %1471 = vmatprep.subr.mxu0 0.0
  %1472 = vmatpush1.msra.mxu0 0.0
  %1473 = vmatprep.subr.mxu0 0.0
  %1474 = vmatpush1.msra.mxu0 0.0
  %1475 = vmatprep.subr.mxu0 0.0
  %1476 = vmatpush1.msra.mxu0 0.0
  %1477 = vmatprep.subr.mxu0 0.0
  %1478 = vmatpush1.msra.mxu0 0.0
  %1479 = vmatprep.subr.mxu0 0.0
  %1480 = vmatpush1.msra.mxu0 0.0
  %1481 = vmatprep.mubr.f32.mxu0 0.0
  %1482 = vmatmul.mubr.f32.gmra.mrb[0].mxu0 %v1415
  %v1483 = vpop.f32.mrb[0].mxu0
  %v1484 = vadd.f32 0.0, %v1483
  %v1485 = vpop.f32.mrb[0].mxu0
  %1486 = vdwg.mxu0
  %v1487 = vadd.f32 %v239, %v1484
  %v1488 = vtanh.pop %v1487
  %v1489 = vmul.f32 %v1488, 0.5
  %v1490 = vadd.f32 %v1489, 0.5
  %v1491 = vmul.f32 %v1490, %v1405
  %1493 = vrot.lane.b32.xlu0 %v1488, 32
  %v1494 = vpop.permute.xlu0 %1493
  %v1496 = vmul.f32 %v1490, %v1494
  %1498 = vrot.lane.b32.xlu0 %v1496, 32
  %v1499 = vpop.permute.xlu0 %1498
  %v1501 = vadd.f32 %v1491, %v1499
  %v1502 = vtanh.pop %v1501
  %1504 = vrot.lane.b32.xlu0 %v1502, 32
  %v1505 = vpop.permute.xlu0 %1504
  %v1507 = vmul.f32 %v1490, %v1505
  %1509 = vrot.lane.b32.xlu0 %v1507, 64
  %v1510 = vpop.permute.xlu0 %1509
  %v1511 = vsel %vm261, %v1510, 0
  %1513 = vmatprep.subr.mxu0 0.0
  %1514 = vmatpush1.msra.mxu0 %v257
  %1515 = vmatprep.subr.mxu0 0.0
  %1516 = vmatpush1.msra.mxu0 %v258
  %1517 = vmatprep.subr.mxu0 0.0
  %1518 = vmatpush1.msra.mxu0 %v259
  %1519 = vmatprep.subr.mxu0 0.0
  %1520 = vmatpush1.msra.mxu0 %v260
  %1521 = vmatprep.subr.mxu0 0.0
  %1522 = vmatpush1.msra.mxu0 0.0
  %1523 = vmatprep.subr.mxu0 0.0
  %1524 = vmatpush1.msra.mxu0 0.0
  %1525 = vmatprep.subr.mxu0 0.0
  %1526 = vmatpush1.msra.mxu0 0.0
  %1527 = vmatprep.subr.mxu0 0.0
  %1528 = vmatpush1.msra.mxu0 0.0
  %1529 = vmatprep.subr.mxu0 0.0
  %1530 = vmatpush1.msra.mxu0 0.0
  %1531 = vmatprep.subr.mxu0 0.0
  %1532 = vmatpush1.msra.mxu0 0.0
  %1533 = vmatprep.subr.mxu0 0.0
  %1534 = vmatpush1.msra.mxu0 0.0
  %1535 = vmatprep.subr.mxu0 0.0
  %1536 = vmatpush1.msra.mxu0 0.0
  %1537 = vmatprep.subr.mxu0 0.0
  %1538 = vmatpush1.msra.mxu0 0.0
  %1539 = vmatprep.subr.mxu0 0.0
  %1540 = vmatpush1.msra.mxu0 0.0
  %1541 = vmatprep.subr.mxu0 0.0
  %1542 = vmatpush1.msra.mxu0 0.0
  %1543 = vmatprep.subr.mxu0 0.0
  %1544 = vmatpush1.msra.mxu0 0.0
  %1545 = vmatprep.subr.mxu0 0.0
  %1546 = vmatpush1.msra.mxu0 0.0
  %1547 = vmatprep.subr.mxu0 0.0
  %1548 = vmatpush1.msra.mxu0 0.0
  %1549 = vmatprep.subr.mxu0 0.0
  %1550 = vmatpush1.msra.mxu0 0.0
  %1551 = vmatprep.subr.mxu0 0.0
  %1552 = vmatpush1.msra.mxu0 0.0
  %1553 = vmatprep.subr.mxu0 0.0
  %1554 = vmatpush1.msra.mxu0 0.0
  %1555 = vmatprep.subr.mxu0 0.0
  %1556 = vmatpush1.msra.mxu0 0.0
  %1557 = vmatprep.subr.mxu0 0.0
  %1558 = vmatpush1.msra.mxu0 0.0
  %1559 = vmatprep.subr.mxu0 0.0
  %1560 = vmatpush1.msra.mxu0 0.0
  %1561 = vmatprep.subr.mxu0 0.0
  %1562 = vmatpush1.msra.mxu0 0.0
  %1563 = vmatprep.subr.mxu0 0.0
  %1564 = vmatpush1.msra.mxu0 0.0
  %1565 = vmatprep.subr.mxu0 0.0
  %1566 = vmatpush1.msra.mxu0 0.0
  %1567 = vmatprep.subr.mxu0 0.0
  %1568 = vmatpush1.msra.mxu0 0.0
  %1569 = vmatprep.subr.mxu0 0.0
  %1570 = vmatpush1.msra.mxu0 0.0
  %1571 = vmatprep.subr.mxu0 0.0
  %1572 = vmatpush1.msra.mxu0 0.0
  %1573 = vmatprep.subr.mxu0 0.0
  %1574 = vmatpush1.msra.mxu0 0.0
  %1575 = vmatprep.subr.mxu0 0.0
  %1576 = vmatpush1.msra.mxu0 0.0
  %1577 = vmatprep.mubr.f32.mxu0 0.0
  %1578 = vmatmul.mubr.f32.gmra.mrb[0].mxu0 %v1511
  %v1579 = vpop.f32.mrb[0].mxu0
  %v1580 = vadd.f32 0.0, %v1579
  %v1581 = vpop.f32.mrb[0].mxu0
  %1582 = vdwg.mxu0
  %v1583 = vadd.f32 %v244, %v1580
  %v1584 = vtanh.pop %v1583
  %v1585 = vmul.f32 %v1584, 0.5
  %v1586 = vadd.f32 %v1585, 0.5
  %v1587 = vmul.f32 %v1586, %v1501
  %1589 = vrot.lane.b32.xlu0 %v1584, 32
  %v1590 = vpop.permute.xlu0 %1589
  %v1592 = vmul.f32 %v1586, %v1590
  %1594 = vrot.lane.b32.xlu0 %v1592, 32
  %v1595 = vpop.permute.xlu0 %1594
  %v1597 = vadd.f32 %v1587, %v1595
  %v1598 = vtanh.pop %v1597
  %1600 = vrot.lane.b32.xlu0 %v1598, 32
  %v1601 = vpop.permute.xlu0 %1600
  %v1603 = vmul.f32 %v1586, %v1601
  %1605 = vrot.lane.b32.xlu0 %v1603, 64
  %v1606 = vpop.permute.xlu0 %1605
  %v1607 = vsel %vm261, %v1606, 0
  %1609 = vmatprep.subr.mxu0 0.0
  %1610 = vmatpush1.msra.mxu0 %v257
  %1611 = vmatprep.subr.mxu0 0.0
  %1612 = vmatpush1.msra.mxu0 %v258
  %1613 = vmatprep.subr.mxu0 0.0
  %1614 = vmatpush1.msra.mxu0 %v259
  %1615 = vmatprep.subr.mxu0 0.0
  %1616 = vmatpush1.msra.mxu0 %v260
  %1617 = vmatprep.subr.mxu0 0.0
  %1618 = vmatpush1.msra.mxu0 0.0
  %1619 = vmatprep.subr.mxu0 0.0
  %1620 = vmatpush1.msra.mxu0 0.0
  %1621 = vmatprep.subr.mxu0 0.0
  %1622 = vmatpush1.msra.mxu0 0.0
  %1623 = vmatprep.subr.mxu0 0.0
  %1624 = vmatpush1.msra.mxu0 0.0
  %1625 = vmatprep.subr.mxu0 0.0
  %1626 = vmatpush1.msra.mxu0 0.0
  %1627 = vmatprep.subr.mxu0 0.0
  %1628 = vmatpush1.msra.mxu0 0.0
  %1629 = vmatprep.subr.mxu0 0.0
  %1630 = vmatpush1.msra.mxu0 0.0
  %1631 = vmatprep.subr.mxu0 0.0
  %1632 = vmatpush1.msra.mxu0 0.0
  %1633 = vmatprep.subr.mxu0 0.0
  %1634 = vmatpush1.msra.mxu0 0.0
  %1635 = vmatprep.subr.mxu0 0.0
  %1636 = vmatpush1.msra.mxu0 0.0
  %1637 = vmatprep.subr.mxu0 0.0
  %1638 = vmatpush1.msra.mxu0 0.0
  %1639 = vmatprep.subr.mxu0 0.0
  %1640 = vmatpush1.msra.mxu0 0.0
  %1641 = vmatprep.subr.mxu0 0.0
  %1642 = vmatpush1.msra.mxu0 0.0
  %1643 = vmatprep.subr.mxu0 0.0
  %1644 = vmatpush1.msra.mxu0 0.0
  %1645 = vmatprep.subr.mxu0 0.0
  %1646 = vmatpush1.msra.mxu0 0.0
  %1647 = vmatprep.subr.mxu0 0.0
  %1648 = vmatpush1.msra.mxu0 0.0
  %1649 = vmatprep.subr.mxu0 0.0
  %1650 = vmatpush1.msra.mxu0 0.0
  %1651 = vmatprep.subr.mxu0 0.0
  %1652 = vmatpush1.msra.mxu0 0.0
  %1653 = vmatprep.subr.mxu0 0.0
  %1654 = vmatpush1.msra.mxu0 0.0
  %1655 = vmatprep.subr.mxu0 0.0
  %1656 = vmatpush1.msra.mxu0 0.0
  %1657 = vmatprep.subr.mxu0 0.0
  %1658 = vmatpush1.msra.mxu0 0.0
  %1659 = vmatprep.subr.mxu0 0.0
  %1660 = vmatpush1.msra.mxu0 0.0
  %1661 = vmatprep.subr.mxu0 0.0
  %1662 = vmatpush1.msra.mxu0 0.0
  %1663 = vmatprep.subr.mxu0 0.0
  %1664 = vmatpush1.msra.mxu0 0.0
  %1665 = vmatprep.subr.mxu0 0.0
  %1666 = vmatpush1.msra.mxu0 0.0
  %1667 = vmatprep.subr.mxu0 0.0
  %1668 = vmatpush1.msra.mxu0 0.0
  %1669 = vmatprep.subr.mxu0 0.0
  %1670 = vmatpush1.msra.mxu0 0.0
  %1671 = vmatprep.subr.mxu0 0.0
  %1672 = vmatpush1.msra.mxu0 0.0
  %1673 = vmatprep.mubr.f32.mxu0 0.0
  %1674 = vmatmul.mubr.f32.gmra.mrb[0].mxu0 %v1607
  %v1675 = vpop.f32.mrb[0].mxu0
  %v1676 = vadd.f32 0.0, %v1675
  %v1677 = vpop.f32.mrb[0].mxu0
  %1678 = vdwg.mxu0
  %v1679 = vadd.f32 %v249, %v1676
  %v1680 = vtanh.pop %v1679
  %v1681 = vmul.f32 %v1680, 0.5
  %v1682 = vadd.f32 %v1681, 0.5
  %v1683 = vmul.f32 %v1682, %v1597
  %1685 = vrot.lane.b32.xlu0 %v1680, 32
  %v1686 = vpop.permute.xlu0 %1685
  %v1688 = vmul.f32 %v1682, %v1686
  %1690 = vrot.lane.b32.xlu0 %v1688, 32
  %v1691 = vpop.permute.xlu0 %1690
  %v1693 = vadd.f32 %v1683, %v1691
  %v1694 = vtanh.pop %v1693
  %1696 = vrot.lane.b32.xlu0 %v1694, 32
  %v1697 = vpop.permute.xlu0 %1696
  %v1699 = vmul.f32 %v1682, %v1697
  %1701 = vrot.lane.b32.xlu0 %v1699, 64
  %v1702 = vpop.permute.xlu0 %1701
  %v1703 = vsel %vm261, %v1702, 0
  %1705 = vmatprep.subr.mxu0 0.0
  %1706 = vmatpush1.msra.mxu0 %v257
  %1707 = vmatprep.subr.mxu0 0.0
  %1708 = vmatpush1.msra.mxu0 %v258
  %1709 = vmatprep.subr.mxu0 0.0
  %1710 = vmatpush1.msra.mxu0 %v259
  %1711 = vmatprep.subr.mxu0 0.0
  %1712 = vmatpush1.msra.mxu0 %v260
  %1713 = vmatprep.subr.mxu0 0.0
  %1714 = vmatpush1.msra.mxu0 0.0
  %1715 = vmatprep.subr.mxu0 0.0
  %1716 = vmatpush1.msra.mxu0 0.0
  %1717 = vmatprep.subr.mxu0 0.0
  %1718 = vmatpush1.msra.mxu0 0.0
  %1719 = vmatprep.subr.mxu0 0.0
  %1720 = vmatpush1.msra.mxu0 0.0
  %1721 = vmatprep.subr.mxu0 0.0
  %1722 = vmatpush1.msra.mxu0 0.0
  %1723 = vmatprep.subr.mxu0 0.0
  %1724 = vmatpush1.msra.mxu0 0.0
  %1725 = vmatprep.subr.mxu0 0.0
  %1726 = vmatpush1.msra.mxu0 0.0
  %1727 = vmatprep.subr.mxu0 0.0
  %1728 = vmatpush1.msra.mxu0 0.0
  %1729 = vmatprep.subr.mxu0 0.0
  %1730 = vmatpush1.msra.mxu0 0.0
  %1731 = vmatprep.subr.mxu0 0.0
  %1732 = vmatpush1.msra.mxu0 0.0
  %1733 = vmatprep.subr.mxu0 0.0
  %1734 = vmatpush1.msra.mxu0 0.0
  %1735 = vmatprep.subr.mxu0 0.0
  %1736 = vmatpush1.msra.mxu0 0.0
  %1737 = vmatprep.subr.mxu0 0.0
  %1738 = vmatpush1.msra.mxu0 0.0
  %1739 = vmatprep.subr.mxu0 0.0
  %1740 = vmatpush1.msra.mxu0 0.0
  %1741 = vmatprep.subr.mxu0 0.0
  %1742 = vmatpush1.msra.mxu0 0.0
  %1743 = vmatprep.subr.mxu0 0.0
  %1744 = vmatpush1.msra.mxu0 0.0
  %1745 = vmatprep.subr.mxu0 0.0
  %1746 = vmatpush1.msra.mxu0 0.0
  %1747 = vmatprep.subr.mxu0 0.0
  %1748 = vmatpush1.msra.mxu0 0.0
  %1749 = vmatprep.subr.mxu0 0.0
  %1750 = vmatpush1.msra.mxu0 0.0
  %1751 = vmatprep.subr.mxu0 0.0
  %1752 = vmatpush1.msra.mxu0 0.0
  %1753 = vmatprep.subr.mxu0 0.0
  %1754 = vmatpush1.msra.mxu0 0.0
  %1755 = vmatprep.subr.mxu0 0.0
  %1756 = vmatpush1.msra.mxu0 0.0
  %1757 = vmatprep.subr.mxu0 0.0
  %1758 = vmatpush1.msra.mxu0 0.0
  %1759 = vmatprep.subr.mxu0 0.0
  %1760 = vmatpush1.msra.mxu0 0.0
  %1761 = vmatprep.subr.mxu0 0.0
  %1762 = vmatpush1.msra.mxu0 0.0
  %1763 = vmatprep.subr.mxu0 0.0
  %1764 = vmatpush1.msra.mxu0 0.0
  %1765 = vmatprep.subr.mxu0 0.0
  %1766 = vmatpush1.msra.mxu0 0.0
  %1767 = vmatprep.subr.mxu0 0.0
  %1768 = vmatpush1.msra.mxu0 0.0
  %1769 = vmatprep.mubr.f32.mxu0 0.0
  %1770 = vmatmul.mubr.f32.gmra.mrb[0].mxu0 %v1703
  %v1771 = vpop.f32.mrb[0].mxu0
  %v1772 = vadd.f32 0.0, %v1771
  %v1773 = vpop.f32.mrb[0].mxu0
  %1774 = vdwg.mxu0
  %v1775 = vadd.f32 %v254, %v1772
  %v1776 = vtanh.pop %v1775
  %v1777 = vmul.f32 %v1776, 0.5
  %v1778 = vadd.f32 %v1777, 0.5
  %v1779 = vmul.f32 %v1778, %v1693
  %1781 = vrot.lane.b32.xlu0 %v1776, 32
  %v1782 = vpop.permute.xlu0 %1781
  %v1784 = vmul.f32 %v1778, %v1782
  %1786 = vrot.lane.b32.xlu0 %v1784, 32
  %v1787 = vpop.permute.xlu0 %1786
  %v1789 = vadd.f32 %v1779, %v1787
  %v1790 = vtanh.pop %v1789
  %1792 = vrot.lane.b32.xlu0 %v1790, 32
  %v1793 = vpop.permute.xlu0 %1792
  %v1795 = vmul.f32 %v1778, %v1793
  %v1796 = vmax.f32 %v1795, 0.0
  %v1797 = vld [vmem:[%s4] sm:$0xff]
  %v1798 = vld [vmem:[%s4 + $0x8] sm:$0xff]
  %v1799 = vld [vmem:[%s4 + $0x10] sm:$0xff]
  %v1800 = vld [vmem:[%s4 + $0x18] sm:$0xff]
  %v1801 = vld [vmem:[%s5] sm:$0x1]
  %v1803 = vlaneseq
  %v1804 = vshrl.u32 %v1803, 7
  %v1805 = vsub.s32 0, %v1804
  %v1806 = vrot.slane %v1801, %v1805
  %1809 = vrot.lane.b32.xlu0 %v1796, 64
  %v1810 = vpop.permute.xlu0 %1809
  %v1811 = vsel %vm261, %v1810, 0
  %1813 = vmatprep.subr.mxu0 0.0
  %1814 = vmatpush1.msra.mxu0 %v1797
  %1815 = vmatprep.subr.mxu0 0.0
  %1816 = vmatpush1.msra.mxu0 %v1798
  %1817 = vmatprep.subr.mxu0 0.0
  %1818 = vmatpush1.msra.mxu0 %v1799
  %1819 = vmatprep.subr.mxu0 0.0
  %1820 = vmatpush1.msra.mxu0 %v1800
  %1821 = vmatprep.subr.mxu0 0.0
  %1822 = vmatpush1.msra.mxu0 0.0
  %1823 = vmatprep.subr.mxu0 0.0
  %1824 = vmatpush1.msra.mxu0 0.0
  %1825 = vmatprep.subr.mxu0 0.0
  %1826 = vmatpush1.msra.mxu0 0.0
  %1827 = vmatprep.subr.mxu0 0.0
  %1828 = vmatpush1.msra.mxu0 0.0
  %1829 = vmatprep.subr.mxu0 0.0
  %1830 = vmatpush1.msra.mxu0 0.0
  %1831 = vmatprep.subr.mxu0 0.0
  %1832 = vmatpush1.msra.mxu0 0.0
  %1833 = vmatprep.subr.mxu0 0.0
  %1834 = vmatpush1.msra.mxu0 0.0
  %1835 = vmatprep.subr.mxu0 0.0
  %1836 = vmatpush1.msra.mxu0 0.0
  %1837 = vmatprep.subr.mxu0 0.0
  %1838 = vmatpush1.msra.mxu0 0.0
  %1839 = vmatprep.subr.mxu0 0.0
  %1840 = vmatpush1.msra.mxu0 0.0
  %1841 = vmatprep.subr.mxu0 0.0
  %1842 = vmatpush1.msra.mxu0 0.0
  %1843 = vmatprep.subr.mxu0 0.0
  %1844 = vmatpush1.msra.mxu0 0.0
  %1845 = vmatprep.subr.mxu0 0.0
  %1846 = vmatpush1.msra.mxu0 0.0
  %1847 = vmatprep.subr.mxu0 0.0
  %1848 = vmatpush1.msra.mxu0 0.0
  %1849 = vmatprep.subr.mxu0 0.0
  %1850 = vmatpush1.msra.mxu0 0.0
  %1851 = vmatprep.subr.mxu0 0.0
  %1852 = vmatpush1.msra.mxu0 0.0
  %1853 = vmatprep.subr.mxu0 0.0
  %1854 = vmatpush1.msra.mxu0 0.0
  %1855 = vmatprep.subr.mxu0 0.0
  %1856 = vmatpush1.msra.mxu0 0.0
  %1857 = vmatprep.subr.mxu0 0.0
  %1858 = vmatpush1.msra.mxu0 0.0
  %1859 = vmatprep.subr.mxu0 0.0
  %1860 = vmatpush1.msra.mxu0 0.0
  %1861 = vmatprep.subr.mxu0 0.0
  %1862 = vmatpush1.msra.mxu0 0.0
  %1863 = vmatprep.subr.mxu0 0.0
  %1864 = vmatpush1.msra.mxu0 0.0
  %1865 = vmatprep.subr.mxu0 0.0
  %1866 = vmatpush1.msra.mxu0 0.0
  %1867 = vmatprep.subr.mxu0 0.0
  %1868 = vmatpush1.msra.mxu0 0.0
  %1869 = vmatprep.subr.mxu0 0.0
  %1870 = vmatpush1.msra.mxu0 0.0
  %1871 = vmatprep.subr.mxu0 0.0
  %1872 = vmatpush1.msra.mxu0 0.0
  %1873 = vmatprep.subr.mxu0 0.0
  %1874 = vmatpush1.msra.mxu0 0.0
  %1875 = vmatprep.subr.mxu0 0.0
  %1876 = vmatpush1.msra.mxu0 0.0
  %1877 = vmatprep.mubr.f32.mxu0 0.0
  %1878 = vmatmul.mubr.f32.gmra.mrb[0].mxu0 %v1811
  %v1879 = vpop.f32.mrb[0].mxu0
  %v1880 = vadd.f32 %v1806, %v1879
  %v1881 = vpop.f32.mrb[0].mxu0
  %1882 = vdwg.mxu0
  %v1883 = vmax.f32 %v1880, 0.0
  %v1884 = vld [vmem:[%s6] sm:$0xff]
  %v1885 = vld [vmem:[%s6 + $0x8] sm:$0xff]
  %v1886 = vld [vmem:[%s6 + $0x10] sm:$0xff]
  %v1887 = vld [vmem:[%s6 + $0x18] sm:$0xff]
  %v1888 = vld [vmem:[%s6 + $0x20] sm:$0xff]
  %v1889 = vld [vmem:[%s6 + $0x28] sm:$0xff]
  %v1890 = vld [vmem:[%s6 + $0x30] sm:$0xff]
  %v1891 = vld [vmem:[%s6 + $0x38] sm:$0xff]
  %v1892 = vld [vmem:[%s6 + $0x40] sm:$0xff]
  %v1893 = vld [vmem:[%s6 + $0x48] sm:$0xff]
  %v1894 = vld [vmem:[%s6 + $0x50] sm:$0xff]
  %v1895 = vld [vmem:[%s6 + $0x58] sm:$0xff]
  %v1896 = vld [vmem:[%s6 + $0x60] sm:$0xff]
  %v1897 = vld [vmem:[%s6 + $0x68] sm:$0xff]
  %v1898 = vld [vmem:[%s6 + $0x70] sm:$0xff]
  %v1899 = vld [vmem:[%s6 + $0x78] sm:$0xff]
  %v1900 = vld [vmem:[%s7] sm:$0x1]
  %v1902 = vlaneseq
  %v1903 = vshrl.u32 %v1902, 7
  %v1904 = vsub.s32 0, %v1903
  %v1905 = vrot.slane %v1900, %v1904
  %1907 = vmatprep.subr.mxu0 0.0
  %1908 = vmatpush1.msra.mxu0 %v1884
  %1909 = vmatprep.subr.mxu0 0.0
  %1910 = vmatpush1.msra.mxu0 %v1885
  %1911 = vmatprep.subr.mxu0 0.0
  %1912 = vmatpush1.msra.mxu0 %v1886
  %1913 = vmatprep.subr.mxu0 0.0
  %1914 = vmatpush1.msra.mxu0 %v1887
  %1915 = vmatprep.subr.mxu0 0.0
  %1916 = vmatpush1.msra.mxu0 %v1888
  %1917 = vmatprep.subr.mxu0 0.0
  %1918 = vmatpush1.msra.mxu0 %v1889
  %1919 = vmatprep.subr.mxu0 0.0
  %1920 = vmatpush1.msra.mxu0 %v1890
  %1921 = vmatprep.subr.mxu0 0.0
  %1922 = vmatpush1.msra.mxu0 %v1891
  %1923 = vmatprep.subr.mxu0 0.0
  %1924 = vmatpush1.msra.mxu0 %v1892
  %1925 = vmatprep.subr.mxu0 0.0
  %1926 = vmatpush1.msra.mxu0 %v1893
  %1927 = vmatprep.subr.mxu0 0.0
  %1928 = vmatpush1.msra.mxu0 %v1894
  %1929 = vmatprep.subr.mxu0 0.0
  %1930 = vmatpush1.msra.mxu0 %v1895
  %1931 = vmatprep.subr.mxu0 0.0
  %1932 = vmatpush1.msra.mxu0 %v1896
  %1933 = vmatprep.subr.mxu0 0.0
  %1934 = vmatpush1.msra.mxu0 %v1897
  %1935 = vmatprep.subr.mxu0 0.0
  %1936 = vmatpush1.msra.mxu0 %v1898
  %1937 = vmatprep.subr.mxu0 0.0
  %1938 = vmatpush1.msra.mxu0 %v1899
  %1939 = vmatprep.subr.mxu0 0.0
  %1940 = vmatpush1.msra.mxu0 0.0
  %1941 = vmatprep.subr.mxu0 0.0
  %1942 = vmatpush1.msra.mxu0 0.0
  %1943 = vmatprep.subr.mxu0 0.0
  %1944 = vmatpush1.msra.mxu0 0.0
  %1945 = vmatprep.subr.mxu0 0.0
  %1946 = vmatpush1.msra.mxu0 0.0
  %1947 = vmatprep.subr.mxu0 0.0
  %1948 = vmatpush1.msra.mxu0 0.0
  %1949 = vmatprep.subr.mxu0 0.0
  %1950 = vmatpush1.msra.mxu0 0.0
  %1951 = vmatprep.subr.mxu0 0.0
  %1952 = vmatpush1.msra.mxu0 0.0
  %1953 = vmatprep.subr.mxu0 0.0
  %1954 = vmatpush1.msra.mxu0 0.0
  %1955 = vmatprep.subr.mxu0 0.0
  %1956 = vmatpush1.msra.mxu0 0.0
  %1957 = vmatprep.subr.mxu0 0.0
  %1958 = vmatpush1.msra.mxu0 0.0
  %1959 = vmatprep.subr.mxu0 0.0
  %1960 = vmatpush1.msra.mxu0 0.0
  %1961 = vmatprep.subr.mxu0 0.0
  %1962 = vmatpush1.msra.mxu0 0.0
  %1963 = vmatprep.subr.mxu0 0.0
  %1964 = vmatpush1.msra.mxu0 0.0
  %1965 = vmatprep.subr.mxu0 0.0
  %1966 = vmatpush1.msra.mxu0 0.0
  %1967 = vmatprep.subr.mxu0 0.0
  %1968 = vmatpush1.msra.mxu0 0.0
  %1969 = vmatprep.subr.mxu0 0.0
  %1970 = vmatpush1.msra.mxu0 0.0
  %1971 = vmatprep.mubr.f32.mxu0 0.0
  %1972 = vmatmul.mubr.f32.gmra.mrb[0].mxu0 %v1883
  %v1973 = vpop.f32.mrb[0].mxu0
  %v1974 = vadd.f32 %v1905, %v1973
  %v1975 = vpop.f32.mrb[0].mxu0
  %1976 = vdwg.mxu0
  %v1977 = vmax.f32 %v1974, 0.0
  %v1978 = vld [vmem:[%s8] sm:$0xff]
  %v1979 = vld [vmem:[%s8 + $0x8] sm:$0xff]
  %v1980 = vld [vmem:[%s8 + $0x10] sm:$0xff]
  %v1981 = vld [vmem:[%s8 + $0x18] sm:$0xff]
  %v1982 = vld [vmem:[%s8 + $0x20] sm:$0xff]
  %v1983 = vld [vmem:[%s8 + $0x28] sm:$0xff]
  %v1984 = vld [vmem:[%s8 + $0x30] sm:$0xff]
  %v1985 = vld [vmem:[%s8 + $0x38] sm:$0xff]
  %v1986 = vld [vmem:[%s9] sm:$0x1]
  %v1988 = vlaneseq
  %v1989 = vshrl.u32 %v1988, 7
  %v1990 = vsub.s32 0, %v1989
  %v1991 = vrot.slane %v1986, %v1990
  %vm1993 = vcmask 523264
  %v1995 = vsel %vm1993, %v1977, 0
  %1997 = vmatprep.subr.mxu0 0.0
  %1998 = vmatpush1.msra.mxu0 %v1978
  %1999 = vmatprep.subr.mxu0 0.0
  %2000 = vmatpush1.msra.mxu0 %v1979
  %2001 = vmatprep.subr.mxu0 0.0
  %2002 = vmatpush1.msra.mxu0 %v1980
  %2003 = vmatprep.subr.mxu0 0.0
  %2004 = vmatpush1.msra.mxu0 %v1981
  %2005 = vmatprep.subr.mxu0 0.0
  %2006 = vmatpush1.msra.mxu0 %v1982
  %2007 = vmatprep.subr.mxu0 0.0
  %2008 = vmatpush1.msra.mxu0 %v1983
  %2009 = vmatprep.subr.mxu0 0.0
  %2010 = vmatpush1.msra.mxu0 %v1984
  %2011 = vmatprep.subr.mxu0 0.0
  %2012 = vmatpush1.msra.mxu0 %v1985
  %2013 = vmatprep.subr.mxu0 0.0
  %2014 = vmatpush1.msra.mxu0 0.0
  %2015 = vmatprep.subr.mxu0 0.0
  %2016 = vmatpush1.msra.mxu0 0.0
  %2017 = vmatprep.subr.mxu0 0.0
  %2018 = vmatpush1.msra.mxu0 0.0
  %2019 = vmatprep.subr.mxu0 0.0
  %2020 = vmatpush1.msra.mxu0 0.0
  %2021 = vmatprep.subr.mxu0 0.0
  %2022 = vmatpush1.msra.mxu0 0.0
  %2023 = vmatprep.subr.mxu0 0.0
  %2024 = vmatpush1.msra.mxu0 0.0
  %2025 = vmatprep.subr.mxu0 0.0
  %2026 = vmatpush1.msra.mxu0 0.0
  %2027 = vmatprep.subr.mxu0 0.0
  %2028 = vmatpush1.msra.mxu0 0.0
  %2029 = vmatprep.subr.mxu0 0.0
  %2030 = vmatpush1.msra.mxu0 0.0
  %2031 = vmatprep.subr.mxu0 0.0
  %2032 = vmatpush1.msra.mxu0 0.0
  %2033 = vmatprep.subr.mxu0 0.0
  %2034 = vmatpush1.msra.mxu0 0.0
  %2035 = vmatprep.subr.mxu0 0.0
  %2036 = vmatpush1.msra.mxu0 0.0
  %2037 = vmatprep.subr.mxu0 0.0
  %2038 = vmatpush1.msra.mxu0 0.0
  %2039 = vmatprep.subr.mxu0 0.0
  %2040 = vmatpush1.msra.mxu0 0.0
  %2041 = vmatprep.subr.mxu0 0.0
  %2042 = vmatpush1.msra.mxu0 0.0
  %2043 = vmatprep.subr.mxu0 0.0
  %2044 = vmatpush1.msra.mxu0 0.0
  %2045 = vmatprep.subr.mxu0 0.0
  %2046 = vmatpush1.msra.mxu0 0.0
  %2047 = vmatprep.subr.mxu0 0.0
  %2048 = vmatpush1.msra.mxu0 0.0
  %2049 = vmatprep.subr.mxu0 0.0
  %2050 = vmatpush1.msra.mxu0 0.0
  %2051 = vmatprep.subr.mxu0 0.0
  %2052 = vmatpush1.msra.mxu0 0.0
  %2053 = vmatprep.subr.mxu0 0.0
  %2054 = vmatpush1.msra.mxu0 0.0
  %2055 = vmatprep.subr.mxu0 0.0
  %2056 = vmatpush1.msra.mxu0 0.0
  %2057 = vmatprep.subr.mxu0 0.0
  %2058 = vmatpush1.msra.mxu0 0.0
  %2059 = vmatprep.subr.mxu0 0.0
  %2060 = vmatpush1.msra.mxu0 0.0
  %2061 = vmatprep.mubr.f32.mxu0 0.0
  %2062 = vmatmul.mubr.f32.gmra.mrb[0].mxu0 %v1995
  %v2063 = vpop.f32.mrb[0].mxu0
  %v2064 = vadd.f32 %v1991, %v2063
  %v2065 = vpop.f32.mrb[0].mxu0
  %2066 = vdwg.mxu0
  %2068 = vrot.lane.b32.xlu0 %v2064, 127
  %v2069 = vpop.permute.xlu0 %2068
  %v2071 = vsub.f32 %v2064, %v2069
  %v2072 = vxor.u32 %v2071, 2147483648
  %v2073 = vmul.f32 %v2072, 1.442695
  %v2074 = vpow.pop %v2073
  %v2075 = vadd.f32 %v2074, 1.0
  %v2076 = vrcp.pop %v2075
  %v2077 = vmul.f32 1.0, %v2076
  %v2078 = vsub.f32 1.0, %v2077
  %2080 = vrot.lane.b32.xlu0 %v2078, 1
  %v2081 = vpop.permute.xlu0 %2080
  %vm2083 = vcmask 7168
  %v2084 = vsel %vm2083, %v2077, %v2081
  %vm2085 = vcmask 15360
  %2086 = vst.msk [vmem:[%s10] sm:$0xff] %vm2085, %v2084
  // Predicated region
  $region42: #{tpu_custom_call.1} parent=0 // pred_check
    _
  $region43: #{tpu_custom_call.1} parent=0 // pred_check_branch
    %2088 = sbr.rel (0) target = $region45
  $region44: #{tpu_custom_call.1} parent=0 // pred_region
    _
  $region45: #{tpu_custom_call.1} parent=0 // pred_fallthru
    _
  // Predicated region
  $region46: #{tpu_custom_call.1} parent=0 // pred_check
    _
  $region47: #{tpu_custom_call.1} parent=0 // pred_check_branch
    %2090 = sbr.rel (0) target = $region49
  $region48: #{tpu_custom_call.1} parent=0 // pred_region
    _
  $region49: #{tpu_custom_call.1} parent=0 // pred_fallthru
    _

</llo_original>
